<compile_context>
chip_gen: v7x
topology: tpu7x:2x2x1
jax: 0.10.0
libtpu: 0.0.40
codegen_flags: <defaults>
</compile_context>

<pallas_src>
import jax
import jax.numpy as jnp
from jax import lax
from jax.experimental import pallas as pl
from jax.experimental.pallas import tpu as pltpu

NUM_FEATURE = 512   # x + x3 requires p == 512, so num_feature is fixed to 512
HID1 = 512
HID2 = 256
NCLASS = 10
TILE_N = 256        # batch tile: safe on v5e (16 MiB scoped) / v6e / v7x (64 MiB)


# ---------------------------------------------------------------------------
# shared in-kernel helpers (trace-time inlined)
# ---------------------------------------------------------------------------
def _row_mask(step, tile_n, n):
    gid = step * tile_n + lax.broadcasted_iota(jnp.int32, (tile_n, 1), 0)
    return gid < n


def _gated_forward(x, fc01, w, w1):
    """x -> (x4, logits): gating block + classifier of the reference."""
    h01 = jnp.dot(x, fc01, preferred_element_type=jnp.float32)     # (t, 1024)
    x1 = h01[:, :HID1]
    x2 = jnp.maximum(h01[:, HID1:], 0.0)
    # sigmoid: exp on EUP, divide as approx reciprocal (also EUP slot)
    sig = pl.reciprocal(1.0 + jnp.exp(-x1), approx=True)
    x4 = x + x2 + sig * x2                                          # x + (1+sig)*x2
    # self.seq = ReLU() + Dropout(p=drop_rate), identity in eval mode
    # TODO(synk): training-mode stochastic dropout not reproduced (eval only).
    h = jnp.maximum(jnp.dot(x4, w, preferred_element_type=jnp.float32), 0.0)
    logits = jnp.dot(h, w1, preferred_element_type=jnp.float32)     # (t, 10)
    return x4, logits


def _argmax_rows(logits):
    col = lax.broadcasted_iota(jnp.int32, logits.shape, 1)
    mx = jnp.max(logits, axis=1, keepdims=True)
    return jnp.min(jnp.where(logits == mx, col, NCLASS), axis=1, keepdims=True)


# ---------------------------------------------------------------------------
# Kernel builders (specialized at trace time on n / tile / Lg / l1)
# ---------------------------------------------------------------------------
def _make_pred_kernel(n, tile_n):
    need_mask = (n % tile_n) != 0

    def kernel(x_ref, fc01_ref, w_ref, w1_ref, pred_ref):
        x = x_ref[...]
        if need_mask:
            x = jnp.where(_row_mask(pl.program_id(0), tile_n, n), x, 0.0)
        _, logits = _gated_forward(x, fc01_ref[...], w_ref[...], w1_ref[...])
        pred_ref[...] = _argmax_rows(logits)

    return kernel


def _make_loss_kernel(n, tile_n, lg, l1):
    p = NUM_FEATURE
    need_mask = (n % tile_n) != 0

    def kernel(x_ref, y_ref, fc01_ref, w_ref, w1_ref, gt_ref,
               loss_ref, acc_ref, *scratch):
        step = pl.program_id(0)
        last = pl.num_programs(0) - 1
        if not lg:
            x_acc, d_acc = scratch   # (p,p) and (1,p) f32 accumulators

        @pl.when(step == 0)
        def _init():
            loss_ref[...] = jnp.zeros_like(loss_ref)
            acc_ref[...] = jnp.zeros_like(acc_ref)
            if not lg:
                x_acc[...] = jnp.zeros_like(x_acc)
                d_acc[...] = jnp.zeros_like(d_acc)

        x = x_ref[...]
        if need_mask:
            mask = _row_mask(step, tile_n, n)
            x = jnp.where(mask, x, 0.0)        # zero padded rows -> x4/U rows = 0

        x4, logits = _gated_forward(x, fc01_ref[...], w_ref[...], w1_ref[...])
        pred = _argmax_rows(logits)                                  # (t, 1)
        y = y_ref[...]                                               # (t, 1) i32

        match = (pred == y).astype(jnp.float32)
        if need_mask:
            match = jnp.where(mask, match, 0.0)
        acc_ref[...] += jnp.sum(match, axis=(0, 1), keepdims=True)

        # U = x4 @ M with M = g*(1-eye)   ==>   U = (x4 @ g) - x4 * g.T
        gt = gt_ref[...]                                             # (1, p)
        s = jnp.sum(x4 * gt, axis=1, keepdims=True)                  # (t, 1)
        U = s - x4 * gt                                              # (t, p)

        if lg:
            diff = x4 - U
            loss_ref[...] += jnp.sum(diff * diff, axis=(0, 1), keepdims=True)
        else:
            # cross-entropy (sum over rows, /n at finalize)
            cls = lax.broadcasted_iota(jnp.int32, logits.shape, 1)
            mx = jnp.max(logits, axis=1, keepdims=True)
            lse = jnp.log(jnp.sum(jnp.exp(logits - mx), axis=1,
                                  keepdims=True)) + mx
            picked = jnp.sum(jnp.where(cls == y, logits, 0.0),
                             axis=1, keepdims=True)
            ce_rows = lse - picked
            if need_mask:
                ce_rows = jnp.where(mask, ce_rows, 0.0)
            loss_ref[...] += jnp.sum(ce_rows, axis=(0, 1), keepdims=True)

            # accumulate X = U.T @ x4 over batch tiles, plus its diagonal
            x_acc[...] += lax.dot_general(
                U, x4, dimension_numbers=(((0,), (0,)), ((), ())),
                preferred_element_type=jnp.float32)                  # (p, p)
            d_acc[...] += jnp.sum(U * x4, axis=0, keepdims=True)     # (1, p)

        @pl.when(step == last)
        def _finalize():
            if lg:
                loss_ref[...] = loss_ref[...] * (10.0 / (n * p))
            else:
                # L1 on weights, computed once
                l1sum = (jnp.sum(jnp.abs(fc01_ref[...]), axis=(0, 1), keepdims=True)
                         + jnp.sum(jnp.abs(w_ref[...]), axis=(0, 1), keepdims=True)
                         + jnp.sum(jnp.abs(w1_ref[...]), axis=(0, 1), keepdims=True))
                xa = x_acc[...]
                da = d_acc[...]
                sxx = jnp.sum(xa * xa, axis=(0, 1), keepdims=True)
                sdd = jnp.sum(da * da, axis=(0, 1), keepdims=True)
                xterm = 10.0 * (sxx - sdd) / (p * p) / n   # offdiag(X).square().mean()/n
                loss_ref[...] = loss_ref[...] / n + l1 * l1sum + xterm
            acc_ref[...] = acc_ref[...] / n

    return kernel


# ---------------------------------------------------------------------------
# Wrappers
# ---------------------------------------------------------------------------
def init_params(key, num_feature=NUM_FEATURE):
    k0, k1, k2, k3, k4 = jax.random.split(key, 5)
    return dict(
        fc0=jax.random.normal(k0, (num_feature, 512), jnp.float32) / num_feature,
        fc1=jax.random.normal(k1, (num_feature, 512), jnp.float32) / num_feature,
        g=jax.random.normal(k2, (num_feature, 1), jnp.float32) / num_feature,
        w=jax.random.normal(k3, (num_feature, HID2), jnp.float32) / num_feature,
        w1=jax.random.normal(k4, (HID2, NCLASS), jnp.float32) / HID2,
    )


def forward(params, x, y=None, Lg=False, l1=1e-4):
    n, p = x.shape
    assert p == NUM_FEATURE, "x + x3 in the reference requires p == 512"

    tile_n = n if n <= TILE_N else TILE_N
    grid = (pl.cdiv(n, tile_n),)

    # pre-concatenate fc0|fc1 -> one MXU matmul with a shared LHS
    fc01 = jnp.concatenate([params["fc0"], params["fc1"]], axis=1)   # (512, 1024)
    gt = params["g"].reshape(1, NUM_FEATURE)                          # g.T (1, 512)

    weight_specs = [
        pl.BlockSpec((p, 2 * HID1), lambda i: (0, 0)),   # fc01 (resident)
        pl.BlockSpec((p, HID2), lambda i: (0, 0)),       # w
        pl.BlockSpec((HID2, NCLASS), lambda i: (0, 0)),  # w1
    ]
    cparams = dict(vmem_limit_bytes=32 * 1024 * 1024)

    if y is None:
        # inference: pred only (no x4/logits writeback, no L1 / loss work)
        pred = pl.pallas_call(
            _make_pred_kernel(n, tile_n),
            out_shape=jax.ShapeDtypeStruct((n, 1), jnp.int32),
            grid=grid,
            in_specs=[pl.BlockSpec((tile_n, p), lambda i: (i, 0))] + weight_specs,
            out_specs=pl.BlockSpec((tile_n, 1), lambda i: (i, 0)),
            compiler_params=pltpu.CompilerParams(
                dimension_semantics=("parallel",), **cparams),
        )(x, fc01, params["w"], params["w1"])
        return pred[:, 0]

    y2 = y.astype(jnp.int32).reshape(n, 1)
    lg = bool(Lg)
    scratch = [] if lg else [pltpu.VMEM((p, p), jnp.float32),
                             pltpu.VMEM((1, p), jnp.float32)]

    # fused forward + loss: scalar outputs accumulated in-kernel across the
    # (sequential) batch grid axis and finalized on the last step.
    # (1,1) scalars kept in VMEM for robust lowering of vector-derived scalars.
    loss, acc = pl.pallas_call(
        _make_loss_kernel(n, tile_n, lg, float(l1)),
        out_shape=(jax.ShapeDtypeStruct((1, 1), jnp.float32),
                   jax.ShapeDtypeStruct((1, 1), jnp.float32)),
        grid=grid,
        in_specs=[pl.BlockSpec((tile_n, p), lambda i: (i, 0)),
                  pl.BlockSpec((tile_n, 1), lambda i: (i, 0))]
                 + weight_specs
                 + [pl.BlockSpec((1, p), lambda i: (0, 0))],
        out_specs=(pl.BlockSpec((1, 1), lambda i: (0, 0)),
                   pl.BlockSpec((1, 1), lambda i: (0, 0))),
        scratch_shapes=scratch,
        compiler_params=pltpu.CompilerParams(
            dimension_semantics=("arbitrary",), **cparams),
    )(x, y2, fc01, params["w"], params["w1"], gt)

    return loss[0, 0], acc[0, 0]


if __name__ == "__main__":
    key = jax.random.PRNGKey(0)
    kp, kx, ky = jax.random.split(key, 3)
    params = init_params(kp)

    # small batch: single tile, grid = (1,)
    n = 8
    x = jax.random.normal(kx, (n, NUM_FEATURE), jnp.float32)
    y = jax.random.randint(ky, (n,), 0, NCLASS, dtype=jnp.int32)

    pred = forward(params, x)                         # inference path (y=None)
    loss, acc = forward(params, x, y, Lg=False, l1=1e-4)
    loss_lg, acc_lg = forward(params, x, y, Lg=True)

    # exercise the gridded path: grid = (2,), partial last block with row mask
    n2 = 384
    x2 = jax.random.normal(kx, (n2, NUM_FEATURE), jnp.float32)
    y2 = jax.random.randint(ky, (n2,), 0, NCLASS, dtype=jnp.int32)
    pred2 = forward(params, x2)
    loss2, acc2 = forward(params, x2, y2, Lg=False, l1=1e-4)
    loss2_lg, acc2_lg = forward(params, x2, y2, Lg=True)

    jax.block_until_ready((pred, loss, acc, loss_lg, acc_lg,
                           pred2, loss2, acc2, loss2_lg, acc2_lg))
    print("KERNEL_OK")
</pallas_src>

<mosaic_0001>
module attributes {stable_mosaic.version = 11 : i64} {
  func.func @kernel(%arg0: i32, %arg1: memref<8x512xf32, #tpu.memory_space<vmem>>, %arg2: memref<512x1024xf32, #tpu.memory_space<vmem>>, %arg3: memref<512x256xf32, #tpu.memory_space<vmem>>, %arg4: memref<256x10xf32, #tpu.memory_space<vmem>>, %arg5: memref<8x1xi32, #tpu.memory_space<vmem>>) attributes {dimension_semantics = [#tpu.dimension_semantics<parallel>], iteration_bounds = array<i64: 1>, scalar_prefetch = 0 : i64, scratch_operands = 0 : i64, tpu.core_type = #tpu.core_type<tc>, window_params = [{transform_indices = @transform_0, window_bounds = array<i64: 8, 512>}, {pipeline_mode = #tpu.pipeline_mode<synchronous>, transform_indices = @transform_1, window_bounds = array<i64: 512, 1024>}, {pipeline_mode = #tpu.pipeline_mode<synchronous>, transform_indices = @transform_2, window_bounds = array<i64: 512, 256>}, {pipeline_mode = #tpu.pipeline_mode<synchronous>, transform_indices = @transform_3, window_bounds = array<i64: 256, 10>}, {transform_indices = @transform_4, window_bounds = array<i64: 8, 1>}]} {
    %c0 = arith.constant 0 : index
    %c0_0 = arith.constant 0 : index
    %0 = vector.load %arg1[%c0, %c0_0] : memref<8x512xf32, #tpu.memory_space<vmem>>, vector<8x512xf32>
    %c0_1 = arith.constant 0 : index
    %c0_2 = arith.constant 0 : index
    %1 = vector.load %arg2[%c0_1, %c0_2] : memref<512x1024xf32, #tpu.memory_space<vmem>>, vector<512x1024xf32>
    %c0_3 = arith.constant 0 : index
    %c0_4 = arith.constant 0 : index
    %2 = vector.load %arg3[%c0_3, %c0_4] : memref<512x256xf32, #tpu.memory_space<vmem>>, vector<512x256xf32>
    %c0_5 = arith.constant 0 : index
    %c0_6 = arith.constant 0 : index
    %3 = vector.load %arg4[%c0_5, %c0_6] : memref<256x10xf32, #tpu.memory_space<vmem>>, vector<256x10xf32>
    %cst = arith.constant dense<0.000000e+00> : vector<8x1024xf32>
    %4 = tpu.matmul %0, %1, %cst {dimension_numbers = #tpu.dot_dimension_numbers<[1], [0], [0], [1], [0, 0, 1, 1], [], []>} : vector<8x512xf32>, vector<512x1024xf32>, vector<8x1024xf32> -> vector<8x1024xf32>
    %5 = vector.extract_strided_slice %4 {offsets = [0, 0], sizes = [8, 512], strides = [1, 1]} : vector<8x1024xf32> to vector<8x512xf32>
    %6 = vector.extract_strided_slice %4 {offsets = [0, 512], sizes = [8, 512], strides = [1, 1]} : vector<8x1024xf32> to vector<8x512xf32>
    %cst_7 = arith.constant 0.000000e+00 : f32
    %7 = vector.broadcast %cst_7 : f32 to vector<8x512xf32>
    %8 = arith.maximumf %6, %7 : vector<8x512xf32>
    %cst_8 = arith.constant 0.000000e+00 : f32
    %9 = vector.broadcast %cst_8 : f32 to vector<8x512xf32>
    %10 = arith.subf %9, %5 : vector<8x512xf32>
    %11 = math.exp %10 : vector<8x512xf32>
    %cst_9 = arith.constant 1.000000e+00 : f32
    %12 = vector.broadcast %cst_9 : f32 to vector<8x512xf32>
    %13 = arith.addf %12, %11 : vector<8x512xf32>
    %14 = tpu.reciprocal %13 {approx = true} : vector<8x512xf32> -> vector<8x512xf32>
    %15 = arith.addf %0, %8 : vector<8x512xf32>
    %16 = arith.mulf %14, %8 : vector<8x512xf32>
    %17 = arith.addf %15, %16 : vector<8x512xf32>
    %cst_10 = arith.constant dense<0.000000e+00> : vector<8x256xf32>
    %18 = tpu.matmul %17, %2, %cst_10 {dimension_numbers = #tpu.dot_dimension_numbers<[1], [0], [0], [1], [0, 0, 1, 1], [], []>} : vector<8x512xf32>, vector<512x256xf32>, vector<8x256xf32> -> vector<8x256xf32>
    %cst_11 = arith.constant 0.000000e+00 : f32
    %19 = vector.broadcast %cst_11 : f32 to vector<8x256xf32>
    %20 = arith.maximumf %18, %19 : vector<8x256xf32>
    %cst_12 = arith.constant dense<0.000000e+00> : vector<8x10xf32>
    %21 = tpu.matmul %20, %3, %cst_12 {dimension_numbers = #tpu.dot_dimension_numbers<[1], [0], [0], [1], [0, 0, 1, 1], [], []>} : vector<8x256xf32>, vector<256x10xf32>, vector<8x10xf32> -> vector<8x10xf32>
    %22 = tpu.iota {dimensions = array<i32: 1>} : vector<8x10xi32>
    %cst_13 = arith.constant dense<0xFF800000> : vector<8xf32>
    %23 = vector.multi_reduction <maximumf>, %21, %cst_13 [1] : vector<8x10xf32> to vector<8xf32>
    %24 = vector.shape_cast %23 : vector<8xf32> to vector<8x1xf32>
    %25 = vector.broadcast %24 : vector<8x1xf32> to vector<8x10xf32>
    %26 = arith.cmpf oeq, %21, %25 : vector<8x10xf32>
    %c10_i32 = arith.constant 10 : i32
    %27 = vector.broadcast %c10_i32 : i32 to vector<8x10xi32>
    %28 = arith.select %26, %22, %27 : vector<8x10xi1>, vector<8x10xi32>
    %cst_14 = arith.constant dense<2147483647> : vector<8xi32>
    %29 = vector.multi_reduction <minsi>, %28, %cst_14 [1] : vector<8x10xi32> to vector<8xi32>
    %30 = vector.shape_cast %29 : vector<8xi32> to vector<8x1xi32>
    %c0_15 = arith.constant 0 : index
    %c0_16 = arith.constant 0 : index
    %31 = vector.load %arg5[%c0_15, %c0_16] : memref<8x1xi32, #tpu.memory_space<vmem>>, vector<8x1xi32>
    tpu.vector_store %arg5[%c0_15, %c0_16], %30 {strides = array<i32>} : memref<8x1xi32, #tpu.memory_space<vmem>>, vector<8x1xi32>,
    return
  }
  func.func @transform_0(%arg0: i32) -> (i32, i32) {
    %c0_i32 = arith.constant 0 : i32
    %c0_i32_0 = arith.constant 0 : i32
    return %arg0, %c0_i32 : i32, i32
  }
  func.func @transform_1(%arg0: i32) -> (i32, i32) {
    %c0_i32 = arith.constant 0 : i32
    %c0_i32_0 = arith.constant 0 : i32
    %c0_i32_1 = arith.constant 0 : i32
    return %c0_i32, %c0_i32_0 : i32, i32
  }
  func.func @transform_2(%arg0: i32) -> (i32, i32) {
    %c0_i32 = arith.constant 0 : i32
    %c0_i32_0 = arith.constant 0 : i32
    %c0_i32_1 = arith.constant 0 : i32
    return %c0_i32, %c0_i32_0 : i32, i32
  }
  func.func @transform_3(%arg0: i32) -> (i32, i32) {
    %c0_i32 = arith.constant 0 : i32
    %c0_i32_0 = arith.constant 0 : i32
    %c0_i32_1 = arith.constant 0 : i32
    return %c0_i32, %c0_i32_0 : i32, i32
  }
  func.func @transform_4(%arg0: i32) -> (i32, i32) {
    %c0_i32 = arith.constant 0 : i32
    %c0_i32_0 = arith.constant 0 : i32
    return %arg0, %c0_i32 : i32, i32
  }
}

</mosaic_0001>

<llo_original>
// kernel: tpu_custom_call.1
$region0: #{tpu_custom_call.1}
  #allocation0 [shape = 'u32[]', space=smem, size = 0x4, offset = 0x4, fixed_abs, tag = 'smem constant byte address 0x4 - core index']
  #allocation1 [shape = 'u32[144,128]{1,0:T(1,128)}', space=vmem, size = 0x12000, scoped, tag = 'internal scratch']
  %s0 = inlined_call_operand.hbm [shape: f32[8,512], index: 0, kind: input, shape index: {}]
  %s1 = inlined_call_operand.hbm [shape: f32[512,1024], index: 1, kind: input, shape index: {}]
  %s2 = inlined_call_operand.hbm [shape: f32[512,256], index: 2, kind: input, shape index: {}]
  %s3 = inlined_call_operand.vmem [shape: f32[256,10], index: 3, kind: input, shape index: {}]
  %s4 = inlined_call_operand.vmem [shape: s32[8,1], index: 4, kind: output, shape index: {}]
  %s5 = sld [smem:[#allocation0]]
  $region38: #{tpu_custom_call.1} parent=0
    _
  %s7 = ssub.s32 1, %s5
  %s8 = scalar_select 0, %s7, %s5
  $region1: #{tpu_custom_call.1} parent=0
    #allocation2 [shape = 'u8[16384]{0}', space=vmem, size = 0x4000, scoped, tag = 'input window, operand 0, single buffered']
    #allocation3 [shape = 's32[1]{0}', space=sflag, size = 0x4, scoped, tag = 'scoped memory for tpu_custom_call.1']
    #allocation4 [shape = 'u8[2097152]{0}', space=vmem, size = 0x200000, scoped, tag = 'input window, operand 1, single buffered']
    #allocation5 [shape = 's32[1]{0}', space=sflag, size = 0x4, scoped, tag = 'scoped memory for tpu_custom_call.1']
    #allocation6 [shape = 'u8[524288]{0}', space=vmem, size = 0x80000, scoped, tag = 'input window, operand 2, single buffered']
    %9 = vsyncpa [#allocation3], 0
    %10 = vsyncpa [#allocation5], 0
    // Predicated region
    $region2: #{tpu_custom_call.1} parent=1 // pred_check
      _
    $region3: #{tpu_custom_call.1} parent=1 // pred_check_branch
      %12 = sbr.rel (0) target = $region5
    $region4: #{tpu_custom_call.1} parent=1 // pred_region
      %s14 = ssub.s32 512, 512
      %15 = vsyncadd [#allocation3], %s14
      %s17 = sshll.u32 [#allocation2], 4
      %s18 = int_to_ptr.vmem [resolvable:$true] %s17
      %20 = dma.hbm_to_vmem [thread:$0]  %s0, 512, %s18, [#allocation3]
    $region5: #{tpu_custom_call.1} parent=1 // pred_fallthru
      _
    // Predicated region
    $region6: #{tpu_custom_call.1} parent=1 // pred_check
      _
    $region7: #{tpu_custom_call.1} parent=1 // pred_check_branch
      %22 = sbr.rel (0) target = $region9
    $region8: #{tpu_custom_call.1} parent=1 // pred_region
      %s24 = ssub.s32 65536, 65536
      %25 = vsyncadd [#allocation5], %s24
      %s26 = sshll.u32 [#allocation4], 4
      %s27 = int_to_ptr.vmem [resolvable:$true] %s26
      %32 = dma.hbm_to_vmem [thread:$0]  %s1, 65536, %s27, [#allocation5], 1024, 1024, 64
    $region9: #{tpu_custom_call.1} parent=1 // pred_fallthru
      _
    // Predicated region
    $region10: #{tpu_custom_call.1} parent=1 // pred_check
      _
    $region11: #{tpu_custom_call.1} parent=1 // pred_check_branch
      %34 = sbr.rel (0) target = $region13
    $region12: #{tpu_custom_call.1} parent=1 // pred_region
      %s36 = ssub.s32 16384, 16384
      %37 = vsyncadd [#allocation5], %s36
      %s38 = sshll.u32 [#allocation6], 4
      %s39 = int_to_ptr.vmem [resolvable:$true] %s38
      %44 = dma.hbm_to_vmem [thread:$0]  %s2, 16384, %s39, [#allocation5], 256, 256, 16
    $region13: #{tpu_custom_call.1} parent=1 // pred_fallthru
      _
    // Predicated region
    $region14: #{tpu_custom_call.1} parent=1 // pred_check
      _
    $region15: #{tpu_custom_call.1} parent=1 // pred_check_branch
      %46 = sbr.rel (0) target = $region17
    $region16: #{tpu_custom_call.1} parent=1 // pred_region
      _
    $region17: #{tpu_custom_call.1} parent=1 // pred_fallthru
      _
    // Predicated region
    $region18: #{tpu_custom_call.1} parent=1 // pred_check
      _
    $region19: #{tpu_custom_call.1} parent=1 // pred_check_branch
      %48 = sbr.rel (0) target = $region21
    $region20: #{tpu_custom_call.1} parent=1 // pred_region
      %49 = dma.done [#allocation3], 512
    $region21: #{tpu_custom_call.1} parent=1 // pred_fallthru
      _
    // Predicated region
    $region22: #{tpu_custom_call.1} parent=1 // pred_check
      _
    $region23: #{tpu_custom_call.1} parent=1 // pred_check_branch
      %51 = sbr.rel (0) target = $region25
    $region24: #{tpu_custom_call.1} parent=1 // pred_region
      %52 = dma.done [#allocation5], 65536
    $region25: #{tpu_custom_call.1} parent=1 // pred_fallthru
      _
    // Predicated region
    $region26: #{tpu_custom_call.1} parent=1 // pred_check
      _
    $region27: #{tpu_custom_call.1} parent=1 // pred_check_branch
      %54 = sbr.rel (0) target = $region29
    $region28: #{tpu_custom_call.1} parent=1 // pred_region
      %55 = dma.done [#allocation5], 16384
    $region29: #{tpu_custom_call.1} parent=1 // pred_fallthru
      _
    %v56 = vld [vmem:[#allocation2] sm:$0xff]
    %v57 = vld [vmem:[#allocation2 + $0x8] sm:$0xff]
    %v58 = vld [vmem:[#allocation2 + $0x10] sm:$0xff]
    %v59 = vld [vmem:[#allocation2 + $0x18] sm:$0xff]
    %v60 = vld [vmem:[#allocation4] sm:$0xff]
    %v61 = vld [vmem:[#allocation4 + $0x8] sm:$0xff]
    %v62 = vld [vmem:[#allocation4 + $0x10] sm:$0xff]
    %v63 = vld [vmem:[#allocation4 + $0x18] sm:$0xff]
    %v64 = vld [vmem:[#allocation4 + $0x20] sm:$0xff]
    %v65 = vld [vmem:[#allocation4 + $0x28] sm:$0xff]
    %v66 = vld [vmem:[#allocation4 + $0x30] sm:$0xff]
    %v67 = vld [vmem:[#allocation4 + $0x38] sm:$0xff]
    %v68 = vld [vmem:[#allocation4 + $0x40] sm:$0xff]
    %v69 = vld [vmem:[#allocation4 + $0x48] sm:$0xff]
    %v70 = vld [vmem:[#allocation4 + $0x50] sm:$0xff]
    %v71 = vld [vmem:[#allocation4 + $0x58] sm:$0xff]
    %v72 = vld [vmem:[#allocation4 + $0x60] sm:$0xff]
    %v73 = vld [vmem:[#allocation4 + $0x68] sm:$0xff]
    %v74 = vld [vmem:[#allocation4 + $0x70] sm:$0xff]
    %v75 = vld [vmem:[#allocation4 + $0x78] sm:$0xff]
    %v76 = vld [vmem:[#allocation4 + $0x80] sm:$0xff]
    %v77 = vld [vmem:[#allocation4 + $0x88] sm:$0xff]
    %v78 = vld [vmem:[#allocation4 + $0x90] sm:$0xff]
    %v79 = vld [vmem:[#allocation4 + $0x98] sm:$0xff]
    %v80 = vld [vmem:[#allocation4 + $0xa0] sm:$0xff]
    %v81 = vld [vmem:[#allocation4 + $0xa8] sm:$0xff]
    %v82 = vld [vmem:[#allocation4 + $0xb0] sm:$0xff]
    %v83 = vld [vmem:[#allocation4 + $0xb8] sm:$0xff]
    %v84 = vld [vmem:[#allocation4 + $0xc0] sm:$0xff]
    %v85 = vld [vmem:[#allocation4 + $0xc8] sm:$0xff]
    %v86 = vld [vmem:[#allocation4 + $0xd0] sm:$0xff]
    %v87 = vld [vmem:[#allocation4 + $0xd8] sm:$0xff]
    %v88 = vld [vmem:[#allocation4 + $0xe0] sm:$0xff]
    %v89 = vld [vmem:[#allocation4 + $0xe8] sm:$0xff]
    %v90 = vld [vmem:[#allocation4 + $0xf0] sm:$0xff]
    %v91 = vld [vmem:[#allocation4 + $0xf8] sm:$0xff]
    %v92 = vld [vmem:[#allocation4 + $0x100] sm:$0xff]
    %v93 = vld [vmem:[#allocation4 + $0x108] sm:$0xff]
    %v94 = vld [vmem:[#allocation4 + $0x110] sm:$0xff]
    %v95 = vld [vmem:[#allocation4 + $0x118] sm:$0xff]
    %v96 = vld [vmem:[#allocation4 + $0x120] sm:$0xff]
    %v97 = vld [vmem:[#allocation4 + $0x128] sm:$0xff]
    %v98 = vld [vmem:[#allocation4 + $0x130] sm:$0xff]
    %v99 = vld [vmem:[#allocation4 + $0x138] sm:$0xff]
    %v100 = vld [vmem:[#allocation4 + $0x140] sm:$0xff]
    %v101 = vld [vmem:[#allocation4 + $0x148] sm:$0xff]
    %v102 = vld [vmem:[#allocation4 + $0x150] sm:$0xff]
    %v103 = vld [vmem:[#allocation4 + $0x158] sm:$0xff]
    %v104 = vld [vmem:[#allocation4 + $0x160] sm:$0xff]
    %v105 = vld [vmem:[#allocation4 + $0x168] sm:$0xff]
    %v106 = vld [vmem:[#allocation4 + $0x170] sm:$0xff]
    %v107 = vld [vmem:[#allocation4 + $0x178] sm:$0xff]
    %v108 = vld [vmem:[#allocation4 + $0x180] sm:$0xff]
    %v109 = vld [vmem:[#allocation4 + $0x188] sm:$0xff]
    %v110 = vld [vmem:[#allocation4 + $0x190] sm:$0xff]
    %v111 = vld [vmem:[#allocation4 + $0x198] sm:$0xff]
    %v112 = vld [vmem:[#allocation4 + $0x1a0] sm:$0xff]
    %v113 = vld [vmem:[#allocation4 + $0x1a8] sm:$0xff]
    %v114 = vld [vmem:[#allocation4 + $0x1b0] sm:$0xff]
    %v115 = vld [vmem:[#allocation4 + $0x1b8] sm:$0xff]
    %v116 = vld [vmem:[#allocation4 + $0x1c0] sm:$0xff]
    %v117 = vld [vmem:[#allocation4 + $0x1c8] sm:$0xff]
    %v118 = vld [vmem:[#allocation4 + $0x1d0] sm:$0xff]
    %v119 = vld [vmem:[#allocation4 + $0x1d8] sm:$0xff]
    %v120 = vld [vmem:[#allocation4 + $0x1e0] sm:$0xff]
    %v121 = vld [vmem:[#allocation4 + $0x1e8] sm:$0xff]
    %v122 = vld [vmem:[#allocation4 + $0x1f0] sm:$0xff]
    %v123 = vld [vmem:[#allocation4 + $0x1f8] sm:$0xff]
    %v124 = vld [vmem:[#allocation4 + $0x200] sm:$0xff]
    %v125 = vld [vmem:[#allocation4 + $0x208] sm:$0xff]
    %v126 = vld [vmem:[#allocation4 + $0x210] sm:$0xff]
    %v127 = vld [vmem:[#allocation4 + $0x218] sm:$0xff]
    %v128 = vld [vmem:[#allocation4 + $0x220] sm:$0xff]
    %v129 = vld [vmem:[#allocation4 + $0x228] sm:$0xff]
    %v130 = vld [vmem:[#allocation4 + $0x230] sm:$0xff]
    %v131 = vld [vmem:[#allocation4 + $0x238] sm:$0xff]
    %v132 = vld [vmem:[#allocation4 + $0x240] sm:$0xff]
    %v133 = vld [vmem:[#allocation4 + $0x248] sm:$0xff]
    %v134 = vld [vmem:[#allocation4 + $0x250] sm:$0xff]
    %v135 = vld [vmem:[#allocation4 + $0x258] sm:$0xff]
    %v136 = vld [vmem:[#allocation4 + $0x260] sm:$0xff]
    %v137 = vld [vmem:[#allocation4 + $0x268] sm:$0xff]
    %v138 = vld [vmem:[#allocation4 + $0x270] sm:$0xff]
    %v139 = vld [vmem:[#allocation4 + $0x278] sm:$0xff]
    %v140 = vld [vmem:[#allocation4 + $0x280] sm:$0xff]
    %v141 = vld [vmem:[#allocation4 + $0x288] sm:$0xff]
    %v142 = vld [vmem:[#allocation4 + $0x290] sm:$0xff]
    %v143 = vld [vmem:[#allocation4 + $0x298] sm:$0xff]
    %v144 = vld [vmem:[#allocation4 + $0x2a0] sm:$0xff]
    %v145 = vld [vmem:[#allocation4 + $0x2a8] sm:$0xff]
    %v146 = vld [vmem:[#allocation4 + $0x2b0] sm:$0xff]
    %v147 = vld [vmem:[#allocation4 + $0x2b8] sm:$0xff]
    %v148 = vld [vmem:[#allocation4 + $0x2c0] sm:$0xff]
    %v149 = vld [vmem:[#allocation4 + $0x2c8] sm:$0xff]
    %v150 = vld [vmem:[#allocation4 + $0x2d0] sm:$0xff]
    %v151 = vld [vmem:[#allocation4 + $0x2d8] sm:$0xff]
    %v152 = vld [vmem:[#allocation4 + $0x2e0] sm:$0xff]
    %v153 = vld [vmem:[#allocation4 + $0x2e8] sm:$0xff]
    %v154 = vld [vmem:[#allocation4 + $0x2f0] sm:$0xff]
    %v155 = vld [vmem:[#allocation4 + $0x2f8] sm:$0xff]
    %v156 = vld [vmem:[#allocation4 + $0x300] sm:$0xff]
    %v157 = vld [vmem:[#allocation4 + $0x308] sm:$0xff]
    %v158 = vld [vmem:[#allocation4 + $0x310] sm:$0xff]
    %v159 = vld [vmem:[#allocation4 + $0x318] sm:$0xff]
    %v160 = vld [vmem:[#allocation4 + $0x320] sm:$0xff]
    %v161 = vld [vmem:[#allocation4 + $0x328] sm:$0xff]
    %v162 = vld [vmem:[#allocation4 + $0x330] sm:$0xff]
    %v163 = vld [vmem:[#allocation4 + $0x338] sm:$0xff]
    %v164 = vld [vmem:[#allocation4 + $0x340] sm:$0xff]
    %v165 = vld [vmem:[#allocation4 + $0x348] sm:$0xff]
    %v166 = vld [vmem:[#allocation4 + $0x350] sm:$0xff]
    %v167 = vld [vmem:[#allocation4 + $0x358] sm:$0xff]
    %v168 = vld [vmem:[#allocation4 + $0x360] sm:$0xff]
    %v169 = vld [vmem:[#allocation4 + $0x368] sm:$0xff]
    %v170 = vld [vmem:[#allocation4 + $0x370] sm:$0xff]
    %v171 = vld [vmem:[#allocation4 + $0x378] sm:$0xff]
    %v172 = vld [vmem:[#allocation4 + $0x380] sm:$0xff]
    %v173 = vld [vmem:[#allocation4 + $0x388] sm:$0xff]
    %v174 = vld [vmem:[#allocation4 + $0x390] sm:$0xff]
    %v175 = vld [vmem:[#allocation4 + $0x398] sm:$0xff]
    %v176 = vld [vmem:[#allocation4 + $0x3a0] sm:$0xff]
    %v177 = vld [vmem:[#allocation4 + $0x3a8] sm:$0xff]
    %v178 = vld [vmem:[#allocation4 + $0x3b0] sm:$0xff]
    %v179 = vld [vmem:[#allocation4 + $0x3b8] sm:$0xff]
    %v180 = vld [vmem:[#allocation4 + $0x3c0] sm:$0xff]
    %v181 = vld [vmem:[#allocation4 + $0x3c8] sm:$0xff]
    %v182 = vld [vmem:[#allocation4 + $0x3d0] sm:$0xff]
    %v183 = vld [vmem:[#allocation4 + $0x3d8] sm:$0xff]
    %v184 = vld [vmem:[#allocation4 + $0x3e0] sm:$0xff]
    %v185 = vld [vmem:[#allocation4 + $0x3e8] sm:$0xff]
    %v186 = vld [vmem:[#allocation4 + $0x3f0] sm:$0xff]
    %v187 = vld [vmem:[#allocation4 + $0x3f8] sm:$0xff]
    %v188 = vld [vmem:[#allocation4 + $0x400] sm:$0xff]
    %v189 = vld [vmem:[#allocation4 + $0x408] sm:$0xff]
    %v190 = vld [vmem:[#allocation4 + $0x410] sm:$0xff]
    %v191 = vld [vmem:[#allocation4 + $0x418] sm:$0xff]
    %v192 = vld [vmem:[#allocation4 + $0x420] sm:$0xff]
    %v193 = vld [vmem:[#allocation4 + $0x428] sm:$0xff]
    %v194 = vld [vmem:[#allocation4 + $0x430] sm:$0xff]
    %v195 = vld [vmem:[#allocation4 + $0x438] sm:$0xff]
    %v196 = vld [vmem:[#allocation4 + $0x440] sm:$0xff]
    %v197 = vld [vmem:[#allocation4 + $0x448] sm:$0xff]
    %v198 = vld [vmem:[#allocation4 + $0x450] sm:$0xff]
    %v199 = vld [vmem:[#allocation4 + $0x458] sm:$0xff]
    %v200 = vld [vmem:[#allocation4 + $0x460] sm:$0xff]
    %v201 = vld [vmem:[#allocation4 + $0x468] sm:$0xff]
    %v202 = vld [vmem:[#allocation4 + $0x470] sm:$0xff]
    %v203 = vld [vmem:[#allocation4 + $0x478] sm:$0xff]
    %v204 = vld [vmem:[#allocation4 + $0x480] sm:$0xff]
    %v205 = vld [vmem:[#allocation4 + $0x488] sm:$0xff]
    %v206 = vld [vmem:[#allocation4 + $0x490] sm:$0xff]
    %v207 = vld [vmem:[#allocation4 + $0x498] sm:$0xff]
    %v208 = vld [vmem:[#allocation4 + $0x4a0] sm:$0xff]
    %v209 = vld [vmem:[#allocation4 + $0x4a8] sm:$0xff]
    %v210 = vld [vmem:[#allocation4 + $0x4b0] sm:$0xff]
    %v211 = vld [vmem:[#allocation4 + $0x4b8] sm:$0xff]
    %v212 = vld [vmem:[#allocation4 + $0x4c0] sm:$0xff]
    %v213 = vld [vmem:[#allocation4 + $0x4c8] sm:$0xff]
    %v214 = vld [vmem:[#allocation4 + $0x4d0] sm:$0xff]
    %v215 = vld [vmem:[#allocation4 + $0x4d8] sm:$0xff]
    %v216 = vld [vmem:[#allocation4 + $0x4e0] sm:$0xff]
    %v217 = vld [vmem:[#allocation4 + $0x4e8] sm:$0xff]
    %v218 = vld [vmem:[#allocation4 + $0x4f0] sm:$0xff]
    %v219 = vld [vmem:[#allocation4 + $0x4f8] sm:$0xff]
    %v220 = vld [vmem:[#allocation4 + $0x500] sm:$0xff]
    %v221 = vld [vmem:[#allocation4 + $0x508] sm:$0xff]
    %v222 = vld [vmem:[#allocation4 + $0x510] sm:$0xff]
    %v223 = vld [vmem:[#allocation4 + $0x518] sm:$0xff]
    %v224 = vld [vmem:[#allocation4 + $0x520] sm:$0xff]
    %v225 = vld [vmem:[#allocation4 + $0x528] sm:$0xff]
    %v226 = vld [vmem:[#allocation4 + $0x530] sm:$0xff]
    %v227 = vld [vmem:[#allocation4 + $0x538] sm:$0xff]
    %v228 = vld [vmem:[#allocation4 + $0x540] sm:$0xff]
    %v229 = vld [vmem:[#allocation4 + $0x548] sm:$0xff]
    %v230 = vld [vmem:[#allocation4 + $0x550] sm:$0xff]
    %v231 = vld [vmem:[#allocation4 + $0x558] sm:$0xff]
    %v232 = vld [vmem:[#allocation4 + $0x560] sm:$0xff]
    %v233 = vld [vmem:[#allocation4 + $0x568] sm:$0xff]
    %v234 = vld [vmem:[#allocation4 + $0x570] sm:$0xff]
    %v235 = vld [vmem:[#allocation4 + $0x578] sm:$0xff]
    %v236 = vld [vmem:[#allocation4 + $0x580] sm:$0xff]
    %v237 = vld [vmem:[#allocation4 + $0x588] sm:$0xff]
    %v238 = vld [vmem:[#allocation4 + $0x590] sm:$0xff]
    %v239 = vld [vmem:[#allocation4 + $0x598] sm:$0xff]
    %v240 = vld [vmem:[#allocation4 + $0x5a0] sm:$0xff]
    %v241 = vld [vmem:[#allocation4 + $0x5a8] sm:$0xff]
    %v242 = vld [vmem:[#allocation4 + $0x5b0] sm:$0xff]
    %v243 = vld [vmem:[#allocation4 + $0x5b8] sm:$0xff]
    %v244 = vld [vmem:[#allocation4 + $0x5c0] sm:$0xff]
    %v245 = vld [vmem:[#allocation4 + $0x5c8] sm:$0xff]
    %v246 = vld [vmem:[#allocation4 + $0x5d0] sm:$0xff]
    %v247 = vld [vmem:[#allocation4 + $0x5d8] sm:$0xff]
    %v248 = vld [vmem:[#allocation4 + $0x5e0] sm:$0xff]
    %v249 = vld [vmem:[#allocation4 + $0x5e8] sm:$0xff]
    %v250 = vld [vmem:[#allocation4 + $0x5f0] sm:$0xff]
    %v251 = vld [vmem:[#allocation4 + $0x5f8] sm:$0xff]
    %v252 = vld [vmem:[#allocation4 + $0x600] sm:$0xff]
    %v253 = vld [vmem:[#allocation4 + $0x608] sm:$0xff]
    %v254 = vld [vmem:[#allocation4 + $0x610] sm:$0xff]
    %v255 = vld [vmem:[#allocation4 + $0x618] sm:$0xff]
    %v256 = vld [vmem:[#allocation4 + $0x620] sm:$0xff]
    %v257 = vld [vmem:[#allocation4 + $0x628] sm:$0xff]
    %v258 = vld [vmem:[#allocation4 + $0x630] sm:$0xff]
    %v259 = vld [vmem:[#allocation4 + $0x638] sm:$0xff]
    %v260 = vld [vmem:[#allocation4 + $0x640] sm:$0xff]
    %v261 = vld [vmem:[#allocation4 + $0x648] sm:$0xff]
    %v262 = vld [vmem:[#allocation4 + $0x650] sm:$0xff]
    %v263 = vld [vmem:[#allocation4 + $0x658] sm:$0xff]
    %v264 = vld [vmem:[#allocation4 + $0x660] sm:$0xff]
    %v265 = vld [vmem:[#allocation4 + $0x668] sm:$0xff]
    %v266 = vld [vmem:[#allocation4 + $0x670] sm:$0xff]
    %v267 = vld [vmem:[#allocation4 + $0x678] sm:$0xff]
    %v268 = vld [vmem:[#allocation4 + $0x680] sm:$0xff]
    %v269 = vld [vmem:[#allocation4 + $0x688] sm:$0xff]
    %v270 = vld [vmem:[#allocation4 + $0x690] sm:$0xff]
    %v271 = vld [vmem:[#allocation4 + $0x698] sm:$0xff]
    %v272 = vld [vmem:[#allocation4 + $0x6a0] sm:$0xff]
    %v273 = vld [vmem:[#allocation4 + $0x6a8] sm:$0xff]
    %v274 = vld [vmem:[#allocation4 + $0x6b0] sm:$0xff]
    %v275 = vld [vmem:[#allocation4 + $0x6b8] sm:$0xff]
    %v276 = vld [vmem:[#allocation4 + $0x6c0] sm:$0xff]
    %v277 = vld [vmem:[#allocation4 + $0x6c8] sm:$0xff]
    %v278 = vld [vmem:[#allocation4 + $0x6d0] sm:$0xff]
    %v279 = vld [vmem:[#allocation4 + $0x6d8] sm:$0xff]
    %v280 = vld [vmem:[#allocation4 + $0x6e0] sm:$0xff]
    %v281 = vld [vmem:[#allocation4 + $0x6e8] sm:$0xff]
    %v282 = vld [vmem:[#allocation4 + $0x6f0] sm:$0xff]
    %v283 = vld [vmem:[#allocation4 + $0x6f8] sm:$0xff]
    %v284 = vld [vmem:[#allocation4 + $0x700] sm:$0xff]
    %v285 = vld [vmem:[#allocation4 + $0x708] sm:$0xff]
    %v286 = vld [vmem:[#allocation4 + $0x710] sm:$0xff]
    %v287 = vld [vmem:[#allocation4 + $0x718] sm:$0xff]
    %v288 = vld [vmem:[#allocation4 + $0x720] sm:$0xff]
    %v289 = vld [vmem:[#allocation4 + $0x728] sm:$0xff]
    %v290 = vld [vmem:[#allocation4 + $0x730] sm:$0xff]
    %v291 = vld [vmem:[#allocation4 + $0x738] sm:$0xff]
    %v292 = vld [vmem:[#allocation4 + $0x740] sm:$0xff]
    %v293 = vld [vmem:[#allocation4 + $0x748] sm:$0xff]
    %v294 = vld [vmem:[#allocation4 + $0x750] sm:$0xff]
    %v295 = vld [vmem:[#allocation4 + $0x758] sm:$0xff]
    %v296 = vld [vmem:[#allocation4 + $0x760] sm:$0xff]
    %v297 = vld [vmem:[#allocation4 + $0x768] sm:$0xff]
    %v298 = vld [vmem:[#allocation4 + $0x770] sm:$0xff]
    %v299 = vld [vmem:[#allocation4 + $0x778] sm:$0xff]
    %v300 = vld [vmem:[#allocation4 + $0x780] sm:$0xff]
    %v301 = vld [vmem:[#allocation4 + $0x788] sm:$0xff]
    %v302 = vld [vmem:[#allocation4 + $0x790] sm:$0xff]
    %v303 = vld [vmem:[#allocation4 + $0x798] sm:$0xff]
    %v304 = vld [vmem:[#allocation4 + $0x7a0] sm:$0xff]
    %v305 = vld [vmem:[#allocation4 + $0x7a8] sm:$0xff]
    %v306 = vld [vmem:[#allocation4 + $0x7b0] sm:$0xff]
    %v307 = vld [vmem:[#allocation4 + $0x7b8] sm:$0xff]
    %v308 = vld [vmem:[#allocation4 + $0x7c0] sm:$0xff]
    %v309 = vld [vmem:[#allocation4 + $0x7c8] sm:$0xff]
    %v310 = vld [vmem:[#allocation4 + $0x7d0] sm:$0xff]
    %v311 = vld [vmem:[#allocation4 + $0x7d8] sm:$0xff]
    %v312 = vld [vmem:[#allocation4 + $0x7e0] sm:$0xff]
    %v313 = vld [vmem:[#allocation4 + $0x7e8] sm:$0xff]
    %v314 = vld [vmem:[#allocation4 + $0x7f0] sm:$0xff]
    %v315 = vld [vmem:[#allocation4 + $0x7f8] sm:$0xff]
    %v316 = vld [vmem:[#allocation4 + $0x800] sm:$0xff]
    %v317 = vld [vmem:[#allocation4 + $0x808] sm:$0xff]
    %v318 = vld [vmem:[#allocation4 + $0x810] sm:$0xff]
    %v319 = vld [vmem:[#allocation4 + $0x818] sm:$0xff]
    %v320 = vld [vmem:[#allocation4 + $0x820] sm:$0xff]
    %v321 = vld [vmem:[#allocation4 + $0x828] sm:$0xff]
    %v322 = vld [vmem:[#allocation4 + $0x830] sm:$0xff]
    %v323 = vld [vmem:[#allocation4 + $0x838] sm:$0xff]
    %v324 = vld [vmem:[#allocation4 + $0x840] sm:$0xff]
    %v325 = vld [vmem:[#allocation4 + $0x848] sm:$0xff]
    %v326 = vld [vmem:[#allocation4 + $0x850] sm:$0xff]
    %v327 = vld [vmem:[#allocation4 + $0x858] sm:$0xff]
    %v328 = vld [vmem:[#allocation4 + $0x860] sm:$0xff]
    %v329 = vld [vmem:[#allocation4 + $0x868] sm:$0xff]
    %v330 = vld [vmem:[#allocation4 + $0x870] sm:$0xff]
    %v331 = vld [vmem:[#allocation4 + $0x878] sm:$0xff]
    %v332 = vld [vmem:[#allocation4 + $0x880] sm:$0xff]
    %v333 = vld [vmem:[#allocation4 + $0x888] sm:$0xff]
    %v334 = vld [vmem:[#allocation4 + $0x890] sm:$0xff]
    %v335 = vld [vmem:[#allocation4 + $0x898] sm:$0xff]
    %v336 = vld [vmem:[#allocation4 + $0x8a0] sm:$0xff]
    %v337 = vld [vmem:[#allocation4 + $0x8a8] sm:$0xff]
    %v338 = vld [vmem:[#allocation4 + $0x8b0] sm:$0xff]
    %v339 = vld [vmem:[#allocation4 + $0x8b8] sm:$0xff]
    %v340 = vld [vmem:[#allocation4 + $0x8c0] sm:$0xff]
    %v341 = vld [vmem:[#allocation4 + $0x8c8] sm:$0xff]
    %v342 = vld [vmem:[#allocation4 + $0x8d0] sm:$0xff]
    %v343 = vld [vmem:[#allocation4 + $0x8d8] sm:$0xff]
    %v344 = vld [vmem:[#allocation4 + $0x8e0] sm:$0xff]
    %v345 = vld [vmem:[#allocation4 + $0x8e8] sm:$0xff]
    %v346 = vld [vmem:[#allocation4 + $0x8f0] sm:$0xff]
    %v347 = vld [vmem:[#allocation4 + $0x8f8] sm:$0xff]
    %v348 = vld [vmem:[#allocation4 + $0x900] sm:$0xff]
    %v349 = vld [vmem:[#allocation4 + $0x908] sm:$0xff]
    %v350 = vld [vmem:[#allocation4 + $0x910] sm:$0xff]
    %v351 = vld [vmem:[#allocation4 + $0x918] sm:$0xff]
    %v352 = vld [vmem:[#allocation4 + $0x920] sm:$0xff]
    %v353 = vld [vmem:[#allocation4 + $0x928] sm:$0xff]
    %v354 = vld [vmem:[#allocation4 + $0x930] sm:$0xff]
    %v355 = vld [vmem:[#allocation4 + $0x938] sm:$0xff]
    %v356 = vld [vmem:[#allocation4 + $0x940] sm:$0xff]
    %v357 = vld [vmem:[#allocation4 + $0x948] sm:$0xff]
    %v358 = vld [vmem:[#allocation4 + $0x950] sm:$0xff]
    %v359 = vld [vmem:[#allocation4 + $0x958] sm:$0xff]
    %v360 = vld [vmem:[#allocation4 + $0x960] sm:$0xff]
    %v361 = vld [vmem:[#allocation4 + $0x968] sm:$0xff]
    %v362 = vld [vmem:[#allocation4 + $0x970] sm:$0xff]
    %v363 = vld [vmem:[#allocation4 + $0x978] sm:$0xff]
    %v364 = vld [vmem:[#allocation4 + $0x980] sm:$0xff]
    %v365 = vld [vmem:[#allocation4 + $0x988] sm:$0xff]
    %v366 = vld [vmem:[#allocation4 + $0x990] sm:$0xff]
    %v367 = vld [vmem:[#allocation4 + $0x998] sm:$0xff]
    %v368 = vld [vmem:[#allocation4 + $0x9a0] sm:$0xff]
    %v369 = vld [vmem:[#allocation4 + $0x9a8] sm:$0xff]
    %v370 = vld [vmem:[#allocation4 + $0x9b0] sm:$0xff]
    %v371 = vld [vmem:[#allocation4 + $0x9b8] sm:$0xff]
    %v372 = vld [vmem:[#allocation4 + $0x9c0] sm:$0xff]
    %v373 = vld [vmem:[#allocation4 + $0x9c8] sm:$0xff]
    %v374 = vld [vmem:[#allocation4 + $0x9d0] sm:$0xff]
    %v375 = vld [vmem:[#allocation4 + $0x9d8] sm:$0xff]
    %v376 = vld [vmem:[#allocation4 + $0x9e0] sm:$0xff]
    %v377 = vld [vmem:[#allocation4 + $0x9e8] sm:$0xff]
    %v378 = vld [vmem:[#allocation4 + $0x9f0] sm:$0xff]
    %v379 = vld [vmem:[#allocation4 + $0x9f8] sm:$0xff]
    %v380 = vld [vmem:[#allocation4 + $0xa00] sm:$0xff]
    %v381 = vld [vmem:[#allocation4 + $0xa08] sm:$0xff]
    %v382 = vld [vmem:[#allocation4 + $0xa10] sm:$0xff]
    %v383 = vld [vmem:[#allocation4 + $0xa18] sm:$0xff]
    %v384 = vld [vmem:[#allocation4 + $0xa20] sm:$0xff]
    %v385 = vld [vmem:[#allocation4 + $0xa28] sm:$0xff]
    %v386 = vld [vmem:[#allocation4 + $0xa30] sm:$0xff]
    %v387 = vld [vmem:[#allocation4 + $0xa38] sm:$0xff]
    %v388 = vld [vmem:[#allocation4 + $0xa40] sm:$0xff]
    %v389 = vld [vmem:[#allocation4 + $0xa48] sm:$0xff]
    %v390 = vld [vmem:[#allocation4 + $0xa50] sm:$0xff]
    %v391 = vld [vmem:[#allocation4 + $0xa58] sm:$0xff]
    %v392 = vld [vmem:[#allocation4 + $0xa60] sm:$0xff]
    %v393 = vld [vmem:[#allocation4 + $0xa68] sm:$0xff]
    %v394 = vld [vmem:[#allocation4 + $0xa70] sm:$0xff]
    %v395 = vld [vmem:[#allocation4 + $0xa78] sm:$0xff]
    %v396 = vld [vmem:[#allocation4 + $0xa80] sm:$0xff]
    %v397 = vld [vmem:[#allocation4 + $0xa88] sm:$0xff]
    %v398 = vld [vmem:[#allocation4 + $0xa90] sm:$0xff]
    %v399 = vld [vmem:[#allocation4 + $0xa98] sm:$0xff]
    %v400 = vld [vmem:[#allocation4 + $0xaa0] sm:$0xff]
    %v401 = vld [vmem:[#allocation4 + $0xaa8] sm:$0xff]
    %v402 = vld [vmem:[#allocation4 + $0xab0] sm:$0xff]
    %v403 = vld [vmem:[#allocation4 + $0xab8] sm:$0xff]
    %v404 = vld [vmem:[#allocation4 + $0xac0] sm:$0xff]
    %v405 = vld [vmem:[#allocation4 + $0xac8] sm:$0xff]
    %v406 = vld [vmem:[#allocation4 + $0xad0] sm:$0xff]
    %v407 = vld [vmem:[#allocation4 + $0xad8] sm:$0xff]
    %v408 = vld [vmem:[#allocation4 + $0xae0] sm:$0xff]
    %v409 = vld [vmem:[#allocation4 + $0xae8] sm:$0xff]
    %v410 = vld [vmem:[#allocation4 + $0xaf0] sm:$0xff]
    %v411 = vld [vmem:[#allocation4 + $0xaf8] sm:$0xff]
    %v412 = vld [vmem:[#allocation4 + $0xb00] sm:$0xff]
    %v413 = vld [vmem:[#allocation4 + $0xb08] sm:$0xff]
    %v414 = vld [vmem:[#allocation4 + $0xb10] sm:$0xff]
    %v415 = vld [vmem:[#allocation4 + $0xb18] sm:$0xff]
    %v416 = vld [vmem:[#allocation4 + $0xb20] sm:$0xff]
    %v417 = vld [vmem:[#allocation4 + $0xb28] sm:$0xff]
    %v418 = vld [vmem:[#allocation4 + $0xb30] sm:$0xff]
    %v419 = vld [vmem:[#allocation4 + $0xb38] sm:$0xff]
    %v420 = vld [vmem:[#allocation4 + $0xb40] sm:$0xff]
    %v421 = vld [vmem:[#allocation4 + $0xb48] sm:$0xff]
    %v422 = vld [vmem:[#allocation4 + $0xb50] sm:$0xff]
    %v423 = vld [vmem:[#allocation4 + $0xb58] sm:$0xff]
    %v424 = vld [vmem:[#allocation4 + $0xb60] sm:$0xff]
    %v425 = vld [vmem:[#allocation4 + $0xb68] sm:$0xff]
    %v426 = vld [vmem:[#allocation4 + $0xb70] sm:$0xff]
    %v427 = vld [vmem:[#allocation4 + $0xb78] sm:$0xff]
    %v428 = vld [vmem:[#allocation4 + $0xb80] sm:$0xff]
    %v429 = vld [vmem:[#allocation4 + $0xb88] sm:$0xff]
    %v430 = vld [vmem:[#allocation4 + $0xb90] sm:$0xff]
    %v431 = vld [vmem:[#allocation4 + $0xb98] sm:$0xff]
    %v432 = vld [vmem:[#allocation4 + $0xba0] sm:$0xff]
    %v433 = vld [vmem:[#allocation4 + $0xba8] sm:$0xff]
    %v434 = vld [vmem:[#allocation4 + $0xbb0] sm:$0xff]
    %v435 = vld [vmem:[#allocation4 + $0xbb8] sm:$0xff]
    %v436 = vld [vmem:[#allocation4 + $0xbc0] sm:$0xff]
    %v437 = vld [vmem:[#allocation4 + $0xbc8] sm:$0xff]
    %v438 = vld [vmem:[#allocation4 + $0xbd0] sm:$0xff]
    %v439 = vld [vmem:[#allocation4 + $0xbd8] sm:$0xff]
    %v440 = vld [vmem:[#allocation4 + $0xbe0] sm:$0xff]
    %v441 = vld [vmem:[#allocation4 + $0xbe8] sm:$0xff]
    %v442 = vld [vmem:[#allocation4 + $0xbf0] sm:$0xff]
    %v443 = vld [vmem:[#allocation4 + $0xbf8] sm:$0xff]
    %v444 = vld [vmem:[#allocation4 + $0xc00] sm:$0xff]
    %v445 = vld [vmem:[#allocation4 + $0xc08] sm:$0xff]
    %v446 = vld [vmem:[#allocation4 + $0xc10] sm:$0xff]
    %v447 = vld [vmem:[#allocation4 + $0xc18] sm:$0xff]
    %v448 = vld [vmem:[#allocation4 + $0xc20] sm:$0xff]
    %v449 = vld [vmem:[#allocation4 + $0xc28] sm:$0xff]
    %v450 = vld [vmem:[#allocation4 + $0xc30] sm:$0xff]
    %v451 = vld [vmem:[#allocation4 + $0xc38] sm:$0xff]
    %v452 = vld [vmem:[#allocation4 + $0xc40] sm:$0xff]
    %v453 = vld [vmem:[#allocation4 + $0xc48] sm:$0xff]
    %v454 = vld [vmem:[#allocation4 + $0xc50] sm:$0xff]
    %v455 = vld [vmem:[#allocation4 + $0xc58] sm:$0xff]
    %v456 = vld [vmem:[#allocation4 + $0xc60] sm:$0xff]
    %v457 = vld [vmem:[#allocation4 + $0xc68] sm:$0xff]
    %v458 = vld [vmem:[#allocation4 + $0xc70] sm:$0xff]
    %v459 = vld [vmem:[#allocation4 + $0xc78] sm:$0xff]
    %v460 = vld [vmem:[#allocation4 + $0xc80] sm:$0xff]
    %v461 = vld [vmem:[#allocation4 + $0xc88] sm:$0xff]
    %v462 = vld [vmem:[#allocation4 + $0xc90] sm:$0xff]
    %v463 = vld [vmem:[#allocation4 + $0xc98] sm:$0xff]
    %v464 = vld [vmem:[#allocation4 + $0xca0] sm:$0xff]
    %v465 = vld [vmem:[#allocation4 + $0xca8] sm:$0xff]
    %v466 = vld [vmem:[#allocation4 + $0xcb0] sm:$0xff]
    %v467 = vld [vmem:[#allocation4 + $0xcb8] sm:$0xff]
    %v468 = vld [vmem:[#allocation4 + $0xcc0] sm:$0xff]
    %v469 = vld [vmem:[#allocation4 + $0xcc8] sm:$0xff]
    %v470 = vld [vmem:[#allocation4 + $0xcd0] sm:$0xff]
    %v471 = vld [vmem:[#allocation4 + $0xcd8] sm:$0xff]
    %v472 = vld [vmem:[#allocation4 + $0xce0] sm:$0xff]
    %v473 = vld [vmem:[#allocation4 + $0xce8] sm:$0xff]
    %v474 = vld [vmem:[#allocation4 + $0xcf0] sm:$0xff]
    %v475 = vld [vmem:[#allocation4 + $0xcf8] sm:$0xff]
    %v476 = vld [vmem:[#allocation4 + $0xd00] sm:$0xff]
    %v477 = vld [vmem:[#allocation4 + $0xd08] sm:$0xff]
    %v478 = vld [vmem:[#allocation4 + $0xd10] sm:$0xff]
    %v479 = vld [vmem:[#allocation4 + $0xd18] sm:$0xff]
    %v480 = vld [vmem:[#allocation4 + $0xd20] sm:$0xff]
    %v481 = vld [vmem:[#allocation4 + $0xd28] sm:$0xff]
    %v482 = vld [vmem:[#allocation4 + $0xd30] sm:$0xff]
    %v483 = vld [vmem:[#allocation4 + $0xd38] sm:$0xff]
    %v484 = vld [vmem:[#allocation4 + $0xd40] sm:$0xff]
    %v485 = vld [vmem:[#allocation4 + $0xd48] sm:$0xff]
    %v486 = vld [vmem:[#allocation4 + $0xd50] sm:$0xff]
    %v487 = vld [vmem:[#allocation4 + $0xd58] sm:$0xff]
    %v488 = vld [vmem:[#allocation4 + $0xd60] sm:$0xff]
    %v489 = vld [vmem:[#allocation4 + $0xd68] sm:$0xff]
    %v490 = vld [vmem:[#allocation4 + $0xd70] sm:$0xff]
    %v491 = vld [vmem:[#allocation4 + $0xd78] sm:$0xff]
    %v492 = vld [vmem:[#allocation4 + $0xd80] sm:$0xff]
    %v493 = vld [vmem:[#allocation4 + $0xd88] sm:$0xff]
    %v494 = vld [vmem:[#allocation4 + $0xd90] sm:$0xff]
    %v495 = vld [vmem:[#allocation4 + $0xd98] sm:$0xff]
    %v496 = vld [vmem:[#allocation4 + $0xda0] sm:$0xff]
    %v497 = vld [vmem:[#allocation4 + $0xda8] sm:$0xff]
    %v498 = vld [vmem:[#allocation4 + $0xdb0] sm:$0xff]
    %v499 = vld [vmem:[#allocation4 + $0xdb8] sm:$0xff]
    %v500 = vld [vmem:[#allocation4 + $0xdc0] sm:$0xff]
    %v501 = vld [vmem:[#allocation4 + $0xdc8] sm:$0xff]
    %v502 = vld [vmem:[#allocation4 + $0xdd0] sm:$0xff]
    %v503 = vld [vmem:[#allocation4 + $0xdd8] sm:$0xff]
    %v504 = vld [vmem:[#allocation4 + $0xde0] sm:$0xff]
    %v505 = vld [vmem:[#allocation4 + $0xde8] sm:$0xff]
    %v506 = vld [vmem:[#allocation4 + $0xdf0] sm:$0xff]
    %v507 = vld [vmem:[#allocation4 + $0xdf8] sm:$0xff]
    %v508 = vld [vmem:[#allocation4 + $0xe00] sm:$0xff]
    %v509 = vld [vmem:[#allocation4 + $0xe08] sm:$0xff]
    %v510 = vld [vmem:[#allocation4 + $0xe10] sm:$0xff]
    %v511 = vld [vmem:[#allocation4 + $0xe18] sm:$0xff]
    %v512 = vld [vmem:[#allocation4 + $0xe20] sm:$0xff]
    %v513 = vld [vmem:[#allocation4 + $0xe28] sm:$0xff]
    %v514 = vld [vmem:[#allocation4 + $0xe30] sm:$0xff]
    %v515 = vld [vmem:[#allocation4 + $0xe38] sm:$0xff]
    %v516 = vld [vmem:[#allocation4 + $0xe40] sm:$0xff]
    %v517 = vld [vmem:[#allocation4 + $0xe48] sm:$0xff]
    %v518 = vld [vmem:[#allocation4 + $0xe50] sm:$0xff]
    %v519 = vld [vmem:[#allocation4 + $0xe58] sm:$0xff]
    %v520 = vld [vmem:[#allocation4 + $0xe60] sm:$0xff]
    %v521 = vld [vmem:[#allocation4 + $0xe68] sm:$0xff]
    %v522 = vld [vmem:[#allocation4 + $0xe70] sm:$0xff]
    %v523 = vld [vmem:[#allocation4 + $0xe78] sm:$0xff]
    %v524 = vld [vmem:[#allocation4 + $0xe80] sm:$0xff]
    %v525 = vld [vmem:[#allocation4 + $0xe88] sm:$0xff]
    %v526 = vld [vmem:[#allocation4 + $0xe90] sm:$0xff]
    %v527 = vld [vmem:[#allocation4 + $0xe98] sm:$0xff]
    %v528 = vld [vmem:[#allocation4 + $0xea0] sm:$0xff]
    %v529 = vld [vmem:[#allocation4 + $0xea8] sm:$0xff]
    %v530 = vld [vmem:[#allocation4 + $0xeb0] sm:$0xff]
    %v531 = vld [vmem:[#allocation4 + $0xeb8] sm:$0xff]
    %v532 = vld [vmem:[#allocation4 + $0xec0] sm:$0xff]
    %v533 = vld [vmem:[#allocation4 + $0xec8] sm:$0xff]
    %v534 = vld [vmem:[#allocation4 + $0xed0] sm:$0xff]
    %v535 = vld [vmem:[#allocation4 + $0xed8] sm:$0xff]
    %v536 = vld [vmem:[#allocation4 + $0xee0] sm:$0xff]
    %v537 = vld [vmem:[#allocation4 + $0xee8] sm:$0xff]
    %v538 = vld [vmem:[#allocation4 + $0xef0] sm:$0xff]
    %v539 = vld [vmem:[#allocation4 + $0xef8] sm:$0xff]
    %v540 = vld [vmem:[#allocation4 + $0xf00] sm:$0xff]
    %v541 = vld [vmem:[#allocation4 + $0xf08] sm:$0xff]
    %v542 = vld [vmem:[#allocation4 + $0xf10] sm:$0xff]
    %v543 = vld [vmem:[#allocation4 + $0xf18] sm:$0xff]
    %v544 = vld [vmem:[#allocation4 + $0xf20] sm:$0xff]
    %v545 = vld [vmem:[#allocation4 + $0xf28] sm:$0xff]
    %v546 = vld [vmem:[#allocation4 + $0xf30] sm:$0xff]
    %v547 = vld [vmem:[#allocation4 + $0xf38] sm:$0xff]
    %v548 = vld [vmem:[#allocation4 + $0xf40] sm:$0xff]
    %v549 = vld [vmem:[#allocation4 + $0xf48] sm:$0xff]
    %v550 = vld [vmem:[#allocation4 + $0xf50] sm:$0xff]
    %v551 = vld [vmem:[#allocation4 + $0xf58] sm:$0xff]
    %v552 = vld [vmem:[#allocation4 + $0xf60] sm:$0xff]
    %v553 = vld [vmem:[#allocation4 + $0xf68] sm:$0xff]
    %v554 = vld [vmem:[#allocation4 + $0xf70] sm:$0xff]
    %v555 = vld [vmem:[#allocation4 + $0xf78] sm:$0xff]
    %v556 = vld [vmem:[#allocation4 + $0xf80] sm:$0xff]
    %v557 = vld [vmem:[#allocation4 + $0xf88] sm:$0xff]
    %v558 = vld [vmem:[#allocation4 + $0xf90] sm:$0xff]
    %v559 = vld [vmem:[#allocation4 + $0xf98] sm:$0xff]
    %v560 = vld [vmem:[#allocation4 + $0xfa0] sm:$0xff]
    %v561 = vld [vmem:[#allocation4 + $0xfa8] sm:$0xff]
    %v562 = vld [vmem:[#allocation4 + $0xfb0] sm:$0xff]
    %v563 = vld [vmem:[#allocation4 + $0xfb8] sm:$0xff]
    %v564 = vld [vmem:[#allocation4 + $0xfc0] sm:$0xff]
    %v565 = vld [vmem:[#allocation4 + $0xfc8] sm:$0xff]
    %v566 = vld [vmem:[#allocation4 + $0xfd0] sm:$0xff]
    %v567 = vld [vmem:[#allocation4 + $0xfd8] sm:$0xff]
    %v568 = vld [vmem:[#allocation4 + $0xfe0] sm:$0xff]
    %v569 = vld [vmem:[#allocation4 + $0xfe8] sm:$0xff]
    %v570 = vld [vmem:[#allocation4 + $0xff0] sm:$0xff]
    %v571 = vld [vmem:[#allocation4 + $0xff8] sm:$0xff]
    %v572 = vld [vmem:[#allocation6] sm:$0xff]
    %v573 = vld [vmem:[#allocation6 + $0x8] sm:$0xff]
    %v574 = vld [vmem:[#allocation6 + $0x10] sm:$0xff]
    %v575 = vld [vmem:[#allocation6 + $0x18] sm:$0xff]
    %v576 = vld [vmem:[#allocation6 + $0x20] sm:$0xff]
    %v577 = vld [vmem:[#allocation6 + $0x28] sm:$0xff]
    %v578 = vld [vmem:[#allocation6 + $0x30] sm:$0xff]
    %v579 = vld [vmem:[#allocation6 + $0x38] sm:$0xff]
    %v580 = vld [vmem:[#allocation6 + $0x40] sm:$0xff]
    %v581 = vld [vmem:[#allocation6 + $0x48] sm:$0xff]
    %v582 = vld [vmem:[#allocation6 + $0x50] sm:$0xff]
    %v583 = vld [vmem:[#allocation6 + $0x58] sm:$0xff]
    %v584 = vld [vmem:[#allocation6 + $0x60] sm:$0xff]
    %v585 = vld [vmem:[#allocation6 + $0x68] sm:$0xff]
    %v586 = vld [vmem:[#allocation6 + $0x70] sm:$0xff]
    %v587 = vld [vmem:[#allocation6 + $0x78] sm:$0xff]
    %v588 = vld [vmem:[#allocation6 + $0x80] sm:$0xff]
    %v589 = vld [vmem:[#allocation6 + $0x88] sm:$0xff]
    %v590 = vld [vmem:[#allocation6 + $0x90] sm:$0xff]
    %v591 = vld [vmem:[#allocation6 + $0x98] sm:$0xff]
    %v592 = vld [vmem:[#allocation6 + $0xa0] sm:$0xff]
    %v593 = vld [vmem:[#allocation6 + $0xa8] sm:$0xff]
    %v594 = vld [vmem:[#allocation6 + $0xb0] sm:$0xff]
    %v595 = vld [vmem:[#allocation6 + $0xb8] sm:$0xff]
    %v596 = vld [vmem:[#allocation6 + $0xc0] sm:$0xff]
    %v597 = vld [vmem:[#allocation6 + $0xc8] sm:$0xff]
    %v598 = vld [vmem:[#allocation6 + $0xd0] sm:$0xff]
    %v599 = vld [vmem:[#allocation6 + $0xd8] sm:$0xff]
    %v600 = vld [vmem:[#allocation6 + $0xe0] sm:$0xff]
    %v601 = vld [vmem:[#allocation6 + $0xe8] sm:$0xff]
    %v602 = vld [vmem:[#allocation6 + $0xf0] sm:$0xff]
    %v603 = vld [vmem:[#allocation6 + $0xf8] sm:$0xff]
    %v604 = vld [vmem:[#allocation6 + $0x100] sm:$0xff]
    %v605 = vld [vmem:[#allocation6 + $0x108] sm:$0xff]
    %v606 = vld [vmem:[#allocation6 + $0x110] sm:$0xff]
    %v607 = vld [vmem:[#allocation6 + $0x118] sm:$0xff]
    %v608 = vld [vmem:[#allocation6 + $0x120] sm:$0xff]
    %v609 = vld [vmem:[#allocation6 + $0x128] sm:$0xff]
    %v610 = vld [vmem:[#allocation6 + $0x130] sm:$0xff]
    %v611 = vld [vmem:[#allocation6 + $0x138] sm:$0xff]
    %v612 = vld [vmem:[#allocation6 + $0x140] sm:$0xff]
    %v613 = vld [vmem:[#allocation6 + $0x148] sm:$0xff]
    %v614 = vld [vmem:[#allocation6 + $0x150] sm:$0xff]
    %v615 = vld [vmem:[#allocation6 + $0x158] sm:$0xff]
    %v616 = vld [vmem:[#allocation6 + $0x160] sm:$0xff]
    %v617 = vld [vmem:[#allocation6 + $0x168] sm:$0xff]
    %v618 = vld [vmem:[#allocation6 + $0x170] sm:$0xff]
    %v619 = vld [vmem:[#allocation6 + $0x178] sm:$0xff]
    %v620 = vld [vmem:[#allocation6 + $0x180] sm:$0xff]
    %v621 = vld [vmem:[#allocation6 + $0x188] sm:$0xff]
    %v622 = vld [vmem:[#allocation6 + $0x190] sm:$0xff]
    %v623 = vld [vmem:[#allocation6 + $0x198] sm:$0xff]
    %v624 = vld [vmem:[#allocation6 + $0x1a0] sm:$0xff]
    %v625 = vld [vmem:[#allocation6 + $0x1a8] sm:$0xff]
    %v626 = vld [vmem:[#allocation6 + $0x1b0] sm:$0xff]
    %v627 = vld [vmem:[#allocation6 + $0x1b8] sm:$0xff]
    %v628 = vld [vmem:[#allocation6 + $0x1c0] sm:$0xff]
    %v629 = vld [vmem:[#allocation6 + $0x1c8] sm:$0xff]
    %v630 = vld [vmem:[#allocation6 + $0x1d0] sm:$0xff]
    %v631 = vld [vmem:[#allocation6 + $0x1d8] sm:$0xff]
    %v632 = vld [vmem:[#allocation6 + $0x1e0] sm:$0xff]
    %v633 = vld [vmem:[#allocation6 + $0x1e8] sm:$0xff]
    %v634 = vld [vmem:[#allocation6 + $0x1f0] sm:$0xff]
    %v635 = vld [vmem:[#allocation6 + $0x1f8] sm:$0xff]
    %v636 = vld [vmem:[#allocation6 + $0x200] sm:$0xff]
    %v637 = vld [vmem:[#allocation6 + $0x208] sm:$0xff]
    %v638 = vld [vmem:[#allocation6 + $0x210] sm:$0xff]
    %v639 = vld [vmem:[#allocation6 + $0x218] sm:$0xff]
    %v640 = vld [vmem:[#allocation6 + $0x220] sm:$0xff]
    %v641 = vld [vmem:[#allocation6 + $0x228] sm:$0xff]
    %v642 = vld [vmem:[#allocation6 + $0x230] sm:$0xff]
    %v643 = vld [vmem:[#allocation6 + $0x238] sm:$0xff]
    %v644 = vld [vmem:[#allocation6 + $0x240] sm:$0xff]
    %v645 = vld [vmem:[#allocation6 + $0x248] sm:$0xff]
    %v646 = vld [vmem:[#allocation6 + $0x250] sm:$0xff]
    %v647 = vld [vmem:[#allocation6 + $0x258] sm:$0xff]
    %v648 = vld [vmem:[#allocation6 + $0x260] sm:$0xff]
    %v649 = vld [vmem:[#allocation6 + $0x268] sm:$0xff]
    %v650 = vld [vmem:[#allocation6 + $0x270] sm:$0xff]
    %v651 = vld [vmem:[#allocation6 + $0x278] sm:$0xff]
    %v652 = vld [vmem:[#allocation6 + $0x280] sm:$0xff]
    %v653 = vld [vmem:[#allocation6 + $0x288] sm:$0xff]
    %v654 = vld [vmem:[#allocation6 + $0x290] sm:$0xff]
    %v655 = vld [vmem:[#allocation6 + $0x298] sm:$0xff]
    %v656 = vld [vmem:[#allocation6 + $0x2a0] sm:$0xff]
    %v657 = vld [vmem:[#allocation6 + $0x2a8] sm:$0xff]
    %v658 = vld [vmem:[#allocation6 + $0x2b0] sm:$0xff]
    %v659 = vld [vmem:[#allocation6 + $0x2b8] sm:$0xff]
    %v660 = vld [vmem:[#allocation6 + $0x2c0] sm:$0xff]
    %v661 = vld [vmem:[#allocation6 + $0x2c8] sm:$0xff]
    %v662 = vld [vmem:[#allocation6 + $0x2d0] sm:$0xff]
    %v663 = vld [vmem:[#allocation6 + $0x2d8] sm:$0xff]
    %v664 = vld [vmem:[#allocation6 + $0x2e0] sm:$0xff]
    %v665 = vld [vmem:[#allocation6 + $0x2e8] sm:$0xff]
    %v666 = vld [vmem:[#allocation6 + $0x2f0] sm:$0xff]
    %v667 = vld [vmem:[#allocation6 + $0x2f8] sm:$0xff]
    %v668 = vld [vmem:[#allocation6 + $0x300] sm:$0xff]
    %v669 = vld [vmem:[#allocation6 + $0x308] sm:$0xff]
    %v670 = vld [vmem:[#allocation6 + $0x310] sm:$0xff]
    %v671 = vld [vmem:[#allocation6 + $0x318] sm:$0xff]
    %v672 = vld [vmem:[#allocation6 + $0x320] sm:$0xff]
    %v673 = vld [vmem:[#allocation6 + $0x328] sm:$0xff]
    %v674 = vld [vmem:[#allocation6 + $0x330] sm:$0xff]
    %v675 = vld [vmem:[#allocation6 + $0x338] sm:$0xff]
    %v676 = vld [vmem:[#allocation6 + $0x340] sm:$0xff]
    %v677 = vld [vmem:[#allocation6 + $0x348] sm:$0xff]
    %v678 = vld [vmem:[#allocation6 + $0x350] sm:$0xff]
    %v679 = vld [vmem:[#allocation6 + $0x358] sm:$0xff]
    %v680 = vld [vmem:[#allocation6 + $0x360] sm:$0xff]
    %v681 = vld [vmem:[#allocation6 + $0x368] sm:$0xff]
    %v682 = vld [vmem:[#allocation6 + $0x370] sm:$0xff]
    %v683 = vld [vmem:[#allocation6 + $0x378] sm:$0xff]
    %v684 = vld [vmem:[#allocation6 + $0x380] sm:$0xff]
    %v685 = vld [vmem:[#allocation6 + $0x388] sm:$0xff]
    %v686 = vld [vmem:[#allocation6 + $0x390] sm:$0xff]
    %v687 = vld [vmem:[#allocation6 + $0x398] sm:$0xff]
    %v688 = vld [vmem:[#allocation6 + $0x3a0] sm:$0xff]
    %v689 = vld [vmem:[#allocation6 + $0x3a8] sm:$0xff]
    %v690 = vld [vmem:[#allocation6 + $0x3b0] sm:$0xff]
    %v691 = vld [vmem:[#allocation6 + $0x3b8] sm:$0xff]
    %v692 = vld [vmem:[#allocation6 + $0x3c0] sm:$0xff]
    %v693 = vld [vmem:[#allocation6 + $0x3c8] sm:$0xff]
    %v694 = vld [vmem:[#allocation6 + $0x3d0] sm:$0xff]
    %v695 = vld [vmem:[#allocation6 + $0x3d8] sm:$0xff]
    %v696 = vld [vmem:[#allocation6 + $0x3e0] sm:$0xff]
    %v697 = vld [vmem:[#allocation6 + $0x3e8] sm:$0xff]
    %v698 = vld [vmem:[#allocation6 + $0x3f0] sm:$0xff]
    %v699 = vld [vmem:[#allocation6 + $0x3f8] sm:$0xff]
    %v700 = vld [vmem:[%s3] sm:$0xff]
    %v701 = vld [vmem:[%s3 + $0x8] sm:$0xff]
    %v702 = vld [vmem:[%s3 + $0x10] sm:$0xff]
    %v703 = vld [vmem:[%s3 + $0x18] sm:$0xff]
    %v704 = vld [vmem:[%s3 + $0x20] sm:$0xff]
    %v705 = vld [vmem:[%s3 + $0x28] sm:$0xff]
    %v706 = vld [vmem:[%s3 + $0x30] sm:$0xff]
    %v707 = vld [vmem:[%s3 + $0x38] sm:$0xff]
    %v708 = vld [vmem:[%s3 + $0x40] sm:$0xff]
    %v709 = vld [vmem:[%s3 + $0x48] sm:$0xff]
    %v710 = vld [vmem:[%s3 + $0x50] sm:$0xff]
    %v711 = vld [vmem:[%s3 + $0x58] sm:$0xff]
    %v712 = vld [vmem:[%s3 + $0x60] sm:$0xff]
    %v713 = vld [vmem:[%s3 + $0x68] sm:$0xff]
    %v714 = vld [vmem:[%s3 + $0x70] sm:$0xff]
    %v715 = vld [vmem:[%s3 + $0x78] sm:$0xff]
    %v716 = vld [vmem:[%s3 + $0x80] sm:$0xff]
    %v717 = vld [vmem:[%s3 + $0x88] sm:$0xff]
    %v718 = vld [vmem:[%s3 + $0x90] sm:$0xff]
    %v719 = vld [vmem:[%s3 + $0x98] sm:$0xff]
    %v720 = vld [vmem:[%s3 + $0xa0] sm:$0xff]
    %v721 = vld [vmem:[%s3 + $0xa8] sm:$0xff]
    %v722 = vld [vmem:[%s3 + $0xb0] sm:$0xff]
    %v723 = vld [vmem:[%s3 + $0xb8] sm:$0xff]
    %v724 = vld [vmem:[%s3 + $0xc0] sm:$0xff]
    %v725 = vld [vmem:[%s3 + $0xc8] sm:$0xff]
    %v726 = vld [vmem:[%s3 + $0xd0] sm:$0xff]
    %v727 = vld [vmem:[%s3 + $0xd8] sm:$0xff]
    %v728 = vld [vmem:[%s3 + $0xe0] sm:$0xff]
    %v729 = vld [vmem:[%s3 + $0xe8] sm:$0xff]
    %v730 = vld [vmem:[%s3 + $0xf0] sm:$0xff]
    %v731 = vld [vmem:[%s3 + $0xf8] sm:$0xff]
    %732 = vmatprep.subr.mxu0 %v61
    %733 = vmatpush1.msra.mxu0 %v60
    %734 = vmatprep.subr.mxu0 %v69
    %735 = vmatpush1.msra.mxu0 %v68
    %736 = vmatprep.subr.mxu0 %v77
    %737 = vmatpush1.msra.mxu0 %v76
    %738 = vmatprep.subr.mxu0 %v85
    %739 = vmatpush1.msra.mxu0 %v84
    %740 = vmatprep.subr.mxu0 %v93
    %741 = vmatpush1.msra.mxu0 %v92
    %742 = vmatprep.subr.mxu0 %v101
    %743 = vmatpush1.msra.mxu0 %v100
    %744 = vmatprep.subr.mxu0 %v109
    %745 = vmatpush1.msra.mxu0 %v108
    %746 = vmatprep.subr.mxu0 %v117
    %747 = vmatpush1.msra.mxu0 %v116
    %748 = vmatprep.subr.mxu0 %v125
    %749 = vmatpush1.msra.mxu0 %v124
    %750 = vmatprep.subr.mxu0 %v133
    %751 = vmatpush1.msra.mxu0 %v132
    %752 = vmatprep.subr.mxu0 %v141
    %753 = vmatpush1.msra.mxu0 %v140
    %754 = vmatprep.subr.mxu0 %v149
    %755 = vmatpush1.msra.mxu0 %v148
    %756 = vmatprep.subr.mxu0 %v157
    %757 = vmatpush1.msra.mxu0 %v156
    %758 = vmatprep.subr.mxu0 %v165
    %759 = vmatpush1.msra.mxu0 %v164
    %760 = vmatprep.subr.mxu0 %v173
    %761 = vmatpush1.msra.mxu0 %v172
    %762 = vmatprep.subr.mxu0 %v181
    %763 = vmatpush1.msra.mxu0 %v180
    %764 = vmatprep.subr.mxu0 %v189
    %765 = vmatpush1.msra.mxu0 %v188
    %766 = vmatprep.subr.mxu0 %v197
    %767 = vmatpush1.msra.mxu0 %v196
    %768 = vmatprep.subr.mxu0 %v205
    %769 = vmatpush1.msra.mxu0 %v204
    %770 = vmatprep.subr.mxu0 %v213
    %771 = vmatpush1.msra.mxu0 %v212
    %772 = vmatprep.subr.mxu0 %v221
    %773 = vmatpush1.msra.mxu0 %v220
    %774 = vmatprep.subr.mxu0 %v229
    %775 = vmatpush1.msra.mxu0 %v228
    %776 = vmatprep.subr.mxu0 %v237
    %777 = vmatpush1.msra.mxu0 %v236
    %778 = vmatprep.subr.mxu0 %v245
    %779 = vmatpush1.msra.mxu0 %v244
    %780 = vmatprep.subr.mxu0 %v253
    %781 = vmatpush1.msra.mxu0 %v252
    %782 = vmatprep.subr.mxu0 %v261
    %783 = vmatpush1.msra.mxu0 %v260
    %784 = vmatprep.subr.mxu0 %v269
    %785 = vmatpush1.msra.mxu0 %v268
    %786 = vmatprep.subr.mxu0 %v277
    %787 = vmatpush1.msra.mxu0 %v276
    %788 = vmatprep.subr.mxu0 %v285
    %789 = vmatpush1.msra.mxu0 %v284
    %790 = vmatprep.subr.mxu0 %v293
    %791 = vmatpush1.msra.mxu0 %v292
    %792 = vmatprep.subr.mxu0 %v301
    %793 = vmatpush1.msra.mxu0 %v300
    %794 = vmatprep.subr.mxu0 %v309
    %795 = vmatpush1.msra.mxu0 %v308
    %796 = vmatprep.mubr.f32.mxu0 %v57
    %797 = vmatmul.mubr.f32.gmra.mrb[0].mxu0 %v56
    %v798 = vpop.f32.mrb[0].mxu0
    %v799 = vadd.f32 0.0, %v798
    %v800 = vpop.f32.mrb[0].mxu0
    %v801 = vadd.f32 0.0, %v800
    %802 = vdwg.mxu0
    %803 = vmatprep.subr.mxu0 %v317
    %804 = vmatpush1.msra.mxu0 %v316
    %805 = vmatprep.subr.mxu0 %v325
    %806 = vmatpush1.msra.mxu0 %v324
    %807 = vmatprep.subr.mxu0 %v333
    %808 = vmatpush1.msra.mxu0 %v332
    %809 = vmatprep.subr.mxu0 %v341
    %810 = vmatpush1.msra.mxu0 %v340
    %811 = vmatprep.subr.mxu0 %v349
    %812 = vmatpush1.msra.mxu0 %v348
    %813 = vmatprep.subr.mxu0 %v357
    %814 = vmatpush1.msra.mxu0 %v356
    %815 = vmatprep.subr.mxu0 %v365
    %816 = vmatpush1.msra.mxu0 %v364
    %817 = vmatprep.subr.mxu0 %v373
    %818 = vmatpush1.msra.mxu0 %v372
    %819 = vmatprep.subr.mxu0 %v381
    %820 = vmatpush1.msra.mxu0 %v380
    %821 = vmatprep.subr.mxu0 %v389
    %822 = vmatpush1.msra.mxu0 %v388
    %823 = vmatprep.subr.mxu0 %v397
    %824 = vmatpush1.msra.mxu0 %v396
    %825 = vmatprep.subr.mxu0 %v405
    %826 = vmatpush1.msra.mxu0 %v404
    %827 = vmatprep.subr.mxu0 %v413
    %828 = vmatpush1.msra.mxu0 %v412
    %829 = vmatprep.subr.mxu0 %v421
    %830 = vmatpush1.msra.mxu0 %v420
    %831 = vmatprep.subr.mxu0 %v429
    %832 = vmatpush1.msra.mxu0 %v428
    %833 = vmatprep.subr.mxu0 %v437
    %834 = vmatpush1.msra.mxu0 %v436
    %835 = vmatprep.subr.mxu0 %v445
    %836 = vmatpush1.msra.mxu0 %v444
    %837 = vmatprep.subr.mxu0 %v453
    %838 = vmatpush1.msra.mxu0 %v452
    %839 = vmatprep.subr.mxu0 %v461
    %840 = vmatpush1.msra.mxu0 %v460
    %841 = vmatprep.subr.mxu0 %v469
    %842 = vmatpush1.msra.mxu0 %v468
    %843 = vmatprep.subr.mxu0 %v477
    %844 = vmatpush1.msra.mxu0 %v476
    %845 = vmatprep.subr.mxu0 %v485
    %846 = vmatpush1.msra.mxu0 %v484
    %847 = vmatprep.subr.mxu0 %v493
    %848 = vmatpush1.msra.mxu0 %v492
    %849 = vmatprep.subr.mxu0 %v501
    %850 = vmatpush1.msra.mxu0 %v500
    %851 = vmatprep.subr.mxu0 %v509
    %852 = vmatpush1.msra.mxu0 %v508
    %853 = vmatprep.subr.mxu0 %v517
    %854 = vmatpush1.msra.mxu0 %v516
    %855 = vmatprep.subr.mxu0 %v525
    %856 = vmatpush1.msra.mxu0 %v524
    %857 = vmatprep.subr.mxu0 %v533
    %858 = vmatpush1.msra.mxu0 %v532
    %859 = vmatprep.subr.mxu0 %v541
    %860 = vmatpush1.msra.mxu0 %v540
    %861 = vmatprep.subr.mxu0 %v549
    %862 = vmatpush1.msra.mxu0 %v548
    %863 = vmatprep.subr.mxu0 %v557
    %864 = vmatpush1.msra.mxu0 %v556
    %865 = vmatprep.subr.mxu0 %v565
    %866 = vmatpush1.msra.mxu0 %v564
    %867 = vmatprep.mubr.f32.mxu0 %v59
    %868 = vmatmul.mubr.f32.gmra.mrb[0].mxu0 %v58
    %v869 = vpop.f32.mrb[0].mxu0
    %v870 = vadd.f32 %v799, %v869
    %v871 = vpop.f32.mrb[0].mxu0
    %v872 = vadd.f32 %v801, %v871
    %873 = vdwg.mxu0
    %874 = vmatprep.subr.mxu0 %v63
    %875 = vmatpush1.msra.mxu0 %v62
    %876 = vmatprep.subr.mxu0 %v71
    %877 = vmatpush1.msra.mxu0 %v70
    %878 = vmatprep.subr.mxu0 %v79
    %879 = vmatpush1.msra.mxu0 %v78
    %880 = vmatprep.subr.mxu0 %v87
    %881 = vmatpush1.msra.mxu0 %v86
    %882 = vmatprep.subr.mxu0 %v95
    %883 = vmatpush1.msra.mxu0 %v94
    %884 = vmatprep.subr.mxu0 %v103
    %885 = vmatpush1.msra.mxu0 %v102
    %886 = vmatprep.subr.mxu0 %v111
    %887 = vmatpush1.msra.mxu0 %v110
    %888 = vmatprep.subr.mxu0 %v119
    %889 = vmatpush1.msra.mxu0 %v118
    %890 = vmatprep.subr.mxu0 %v127
    %891 = vmatpush1.msra.mxu0 %v126
    %892 = vmatprep.subr.mxu0 %v135
    %893 = vmatpush1.msra.mxu0 %v134
    %894 = vmatprep.subr.mxu0 %v143
    %895 = vmatpush1.msra.mxu0 %v142
    %896 = vmatprep.subr.mxu0 %v151
    %897 = vmatpush1.msra.mxu0 %v150
    %898 = vmatprep.subr.mxu0 %v159
    %899 = vmatpush1.msra.mxu0 %v158
    %900 = vmatprep.subr.mxu0 %v167
    %901 = vmatpush1.msra.mxu0 %v166
    %902 = vmatprep.subr.mxu0 %v175
    %903 = vmatpush1.msra.mxu0 %v174
    %904 = vmatprep.subr.mxu0 %v183
    %905 = vmatpush1.msra.mxu0 %v182
    %906 = vmatprep.subr.mxu0 %v191
    %907 = vmatpush1.msra.mxu0 %v190
    %908 = vmatprep.subr.mxu0 %v199
    %909 = vmatpush1.msra.mxu0 %v198
    %910 = vmatprep.subr.mxu0 %v207
    %911 = vmatpush1.msra.mxu0 %v206
    %912 = vmatprep.subr.mxu0 %v215
    %913 = vmatpush1.msra.mxu0 %v214
    %914 = vmatprep.subr.mxu0 %v223
    %915 = vmatpush1.msra.mxu0 %v222
    %916 = vmatprep.subr.mxu0 %v231
    %917 = vmatpush1.msra.mxu0 %v230
    %918 = vmatprep.subr.mxu0 %v239
    %919 = vmatpush1.msra.mxu0 %v238
    %920 = vmatprep.subr.mxu0 %v247
    %921 = vmatpush1.msra.mxu0 %v246
    %922 = vmatprep.subr.mxu0 %v255
    %923 = vmatpush1.msra.mxu0 %v254
    %924 = vmatprep.subr.mxu0 %v263
    %925 = vmatpush1.msra.mxu0 %v262
    %926 = vmatprep.subr.mxu0 %v271
    %927 = vmatpush1.msra.mxu0 %v270
    %928 = vmatprep.subr.mxu0 %v279
    %929 = vmatpush1.msra.mxu0 %v278
    %930 = vmatprep.subr.mxu0 %v287
    %931 = vmatpush1.msra.mxu0 %v286
    %932 = vmatprep.subr.mxu0 %v295
    %933 = vmatpush1.msra.mxu0 %v294
    %934 = vmatprep.subr.mxu0 %v303
    %935 = vmatpush1.msra.mxu0 %v302
    %936 = vmatprep.subr.mxu0 %v311
    %937 = vmatpush1.msra.mxu0 %v310
    %938 = vmatprep.mubr.f32.mxu0 %v57
    %939 = vmatmul.mubr.f32.gmra.mrb[0].mxu0 %v56
    %v940 = vpop.f32.mrb[0].mxu0
    %v941 = vadd.f32 0.0, %v940
    %v942 = vpop.f32.mrb[0].mxu0
    %v943 = vadd.f32 0.0, %v942
    %944 = vdwg.mxu0
    %945 = vmatprep.subr.mxu0 %v319
    %946 = vmatpush1.msra.mxu0 %v318
    %947 = vmatprep.subr.mxu0 %v327
    %948 = vmatpush1.msra.mxu0 %v326
    %949 = vmatprep.subr.mxu0 %v335
    %950 = vmatpush1.msra.mxu0 %v334
    %951 = vmatprep.subr.mxu0 %v343
    %952 = vmatpush1.msra.mxu0 %v342
    %953 = vmatprep.subr.mxu0 %v351
    %954 = vmatpush1.msra.mxu0 %v350
    %955 = vmatprep.subr.mxu0 %v359
    %956 = vmatpush1.msra.mxu0 %v358
    %957 = vmatprep.subr.mxu0 %v367
    %958 = vmatpush1.msra.mxu0 %v366
    %959 = vmatprep.subr.mxu0 %v375
    %960 = vmatpush1.msra.mxu0 %v374
    %961 = vmatprep.subr.mxu0 %v383
    %962 = vmatpush1.msra.mxu0 %v382
    %963 = vmatprep.subr.mxu0 %v391
    %964 = vmatpush1.msra.mxu0 %v390
    %965 = vmatprep.subr.mxu0 %v399
    %966 = vmatpush1.msra.mxu0 %v398
    %967 = vmatprep.subr.mxu0 %v407
    %968 = vmatpush1.msra.mxu0 %v406
    %969 = vmatprep.subr.mxu0 %v415
    %970 = vmatpush1.msra.mxu0 %v414
    %971 = vmatprep.subr.mxu0 %v423
    %972 = vmatpush1.msra.mxu0 %v422
    %973 = vmatprep.subr.mxu0 %v431
    %974 = vmatpush1.msra.mxu0 %v430
    %975 = vmatprep.subr.mxu0 %v439
    %976 = vmatpush1.msra.mxu0 %v438
    %977 = vmatprep.subr.mxu0 %v447
    %978 = vmatpush1.msra.mxu0 %v446
    %979 = vmatprep.subr.mxu0 %v455
    %980 = vmatpush1.msra.mxu0 %v454
    %981 = vmatprep.subr.mxu0 %v463
    %982 = vmatpush1.msra.mxu0 %v462
    %983 = vmatprep.subr.mxu0 %v471
    %984 = vmatpush1.msra.mxu0 %v470
    %985 = vmatprep.subr.mxu0 %v479
    %986 = vmatpush1.msra.mxu0 %v478
    %987 = vmatprep.subr.mxu0 %v487
    %988 = vmatpush1.msra.mxu0 %v486
    %989 = vmatprep.subr.mxu0 %v495
    %990 = vmatpush1.msra.mxu0 %v494
    %991 = vmatprep.subr.mxu0 %v503
    %992 = vmatpush1.msra.mxu0 %v502
    %993 = vmatprep.subr.mxu0 %v511
    %994 = vmatpush1.msra.mxu0 %v510
    %995 = vmatprep.subr.mxu0 %v519
    %996 = vmatpush1.msra.mxu0 %v518
    %997 = vmatprep.subr.mxu0 %v527
    %998 = vmatpush1.msra.mxu0 %v526
    %999 = vmatprep.subr.mxu0 %v535
    %1000 = vmatpush1.msra.mxu0 %v534
    %1001 = vmatprep.subr.mxu0 %v543
    %1002 = vmatpush1.msra.mxu0 %v542
    %1003 = vmatprep.subr.mxu0 %v551
    %1004 = vmatpush1.msra.mxu0 %v550
    %1005 = vmatprep.subr.mxu0 %v559
    %1006 = vmatpush1.msra.mxu0 %v558
    %1007 = vmatprep.subr.mxu0 %v567
    %1008 = vmatpush1.msra.mxu0 %v566
    %1009 = vmatprep.mubr.f32.mxu0 %v59
    %1010 = vmatmul.mubr.f32.gmra.mrb[0].mxu0 %v58
    %v1011 = vpop.f32.mrb[0].mxu0
    %v1012 = vadd.f32 %v941, %v1011
    %v1013 = vpop.f32.mrb[0].mxu0
    %v1014 = vadd.f32 %v943, %v1013
    %1015 = vdwg.mxu0
    %1016 = vmatprep.subr.mxu0 %v65
    %1017 = vmatpush1.msra.mxu0 %v64
    %1018 = vmatprep.subr.mxu0 %v73
    %1019 = vmatpush1.msra.mxu0 %v72
    %1020 = vmatprep.subr.mxu0 %v81
    %1021 = vmatpush1.msra.mxu0 %v80
    %1022 = vmatprep.subr.mxu0 %v89
    %1023 = vmatpush1.msra.mxu0 %v88
    %1024 = vmatprep.subr.mxu0 %v97
    %1025 = vmatpush1.msra.mxu0 %v96
    %1026 = vmatprep.subr.mxu0 %v105
    %1027 = vmatpush1.msra.mxu0 %v104
    %1028 = vmatprep.subr.mxu0 %v113
    %1029 = vmatpush1.msra.mxu0 %v112
    %1030 = vmatprep.subr.mxu0 %v121
    %1031 = vmatpush1.msra.mxu0 %v120
    %1032 = vmatprep.subr.mxu0 %v129
    %1033 = vmatpush1.msra.mxu0 %v128
    %1034 = vmatprep.subr.mxu0 %v137
    %1035 = vmatpush1.msra.mxu0 %v136
    %1036 = vmatprep.subr.mxu0 %v145
    %1037 = vmatpush1.msra.mxu0 %v144
    %1038 = vmatprep.subr.mxu0 %v153
    %1039 = vmatpush1.msra.mxu0 %v152
    %1040 = vmatprep.subr.mxu0 %v161
    %1041 = vmatpush1.msra.mxu0 %v160
    %1042 = vmatprep.subr.mxu0 %v169
    %1043 = vmatpush1.msra.mxu0 %v168
    %1044 = vmatprep.subr.mxu0 %v177
    %1045 = vmatpush1.msra.mxu0 %v176
    %1046 = vmatprep.subr.mxu0 %v185
    %1047 = vmatpush1.msra.mxu0 %v184
    %1048 = vmatprep.subr.mxu0 %v193
    %1049 = vmatpush1.msra.mxu0 %v192
    %1050 = vmatprep.subr.mxu0 %v201
    %1051 = vmatpush1.msra.mxu0 %v200
    %1052 = vmatprep.subr.mxu0 %v209
    %1053 = vmatpush1.msra.mxu0 %v208
    %1054 = vmatprep.subr.mxu0 %v217
    %1055 = vmatpush1.msra.mxu0 %v216
    %1056 = vmatprep.subr.mxu0 %v225
    %1057 = vmatpush1.msra.mxu0 %v224
    %1058 = vmatprep.subr.mxu0 %v233
    %1059 = vmatpush1.msra.mxu0 %v232
    %1060 = vmatprep.subr.mxu0 %v241
    %1061 = vmatpush1.msra.mxu0 %v240
    %1062 = vmatprep.subr.mxu0 %v249
    %1063 = vmatpush1.msra.mxu0 %v248
    %1064 = vmatprep.subr.mxu0 %v257
    %1065 = vmatpush1.msra.mxu0 %v256
    %1066 = vmatprep.subr.mxu0 %v265
    %1067 = vmatpush1.msra.mxu0 %v264
    %1068 = vmatprep.subr.mxu0 %v273
    %1069 = vmatpush1.msra.mxu0 %v272
    %1070 = vmatprep.subr.mxu0 %v281
    %1071 = vmatpush1.msra.mxu0 %v280
    %1072 = vmatprep.subr.mxu0 %v289
    %1073 = vmatpush1.msra.mxu0 %v288
    %1074 = vmatprep.subr.mxu0 %v297
    %1075 = vmatpush1.msra.mxu0 %v296
    %1076 = vmatprep.subr.mxu0 %v305
    %1077 = vmatpush1.msra.mxu0 %v304
    %1078 = vmatprep.subr.mxu0 %v313
    %1079 = vmatpush1.msra.mxu0 %v312
    %1080 = vmatprep.mubr.f32.mxu0 %v57
    %1081 = vmatmul.mubr.f32.gmra.mrb[0].mxu0 %v56
    %v1082 = vpop.f32.mrb[0].mxu0
    %v1083 = vadd.f32 0.0, %v1082
    %v1084 = vpop.f32.mrb[0].mxu0
    %v1085 = vadd.f32 0.0, %v1084
    %1086 = vdwg.mxu0
    %1087 = vmatprep.subr.mxu0 %v321
    %1088 = vmatpush1.msra.mxu0 %v320
    %1089 = vmatprep.subr.mxu0 %v329
    %1090 = vmatpush1.msra.mxu0 %v328
    %1091 = vmatprep.subr.mxu0 %v337
    %1092 = vmatpush1.msra.mxu0 %v336
    %1093 = vmatprep.subr.mxu0 %v345
    %1094 = vmatpush1.msra.mxu0 %v344
    %1095 = vmatprep.subr.mxu0 %v353
    %1096 = vmatpush1.msra.mxu0 %v352
    %1097 = vmatprep.subr.mxu0 %v361
    %1098 = vmatpush1.msra.mxu0 %v360
    %1099 = vmatprep.subr.mxu0 %v369
    %1100 = vmatpush1.msra.mxu0 %v368
    %1101 = vmatprep.subr.mxu0 %v377
    %1102 = vmatpush1.msra.mxu0 %v376
    %1103 = vmatprep.subr.mxu0 %v385
    %1104 = vmatpush1.msra.mxu0 %v384
    %1105 = vmatprep.subr.mxu0 %v393
    %1106 = vmatpush1.msra.mxu0 %v392
    %1107 = vmatprep.subr.mxu0 %v401
    %1108 = vmatpush1.msra.mxu0 %v400
    %1109 = vmatprep.subr.mxu0 %v409
    %1110 = vmatpush1.msra.mxu0 %v408
    %1111 = vmatprep.subr.mxu0 %v417
    %1112 = vmatpush1.msra.mxu0 %v416
    %1113 = vmatprep.subr.mxu0 %v425
    %1114 = vmatpush1.msra.mxu0 %v424
    %1115 = vmatprep.subr.mxu0 %v433
    %1116 = vmatpush1.msra.mxu0 %v432
    %1117 = vmatprep.subr.mxu0 %v441
    %1118 = vmatpush1.msra.mxu0 %v440
    %1119 = vmatprep.subr.mxu0 %v449
    %1120 = vmatpush1.msra.mxu0 %v448
    %1121 = vmatprep.subr.mxu0 %v457
    %1122 = vmatpush1.msra.mxu0 %v456
    %1123 = vmatprep.subr.mxu0 %v465
    %1124 = vmatpush1.msra.mxu0 %v464
    %1125 = vmatprep.subr.mxu0 %v473
    %1126 = vmatpush1.msra.mxu0 %v472
    %1127 = vmatprep.subr.mxu0 %v481
    %1128 = vmatpush1.msra.mxu0 %v480
    %1129 = vmatprep.subr.mxu0 %v489
    %1130 = vmatpush1.msra.mxu0 %v488
    %1131 = vmatprep.subr.mxu0 %v497
    %1132 = vmatpush1.msra.mxu0 %v496
    %1133 = vmatprep.subr.mxu0 %v505
    %1134 = vmatpush1.msra.mxu0 %v504
    %1135 = vmatprep.subr.mxu0 %v513
    %1136 = vmatpush1.msra.mxu0 %v512
    %1137 = vmatprep.subr.mxu0 %v521
    %1138 = vmatpush1.msra.mxu0 %v520
    %1139 = vmatprep.subr.mxu0 %v529
    %1140 = vmatpush1.msra.mxu0 %v528
    %1141 = vmatprep.subr.mxu0 %v537
    %1142 = vmatpush1.msra.mxu0 %v536
    %1143 = vmatprep.subr.mxu0 %v545
    %1144 = vmatpush1.msra.mxu0 %v544
    %1145 = vmatprep.subr.mxu0 %v553
    %1146 = vmatpush1.msra.mxu0 %v552
    %1147 = vmatprep.subr.mxu0 %v561
    %1148 = vmatpush1.msra.mxu0 %v560
    %1149 = vmatprep.subr.mxu0 %v569
    %1150 = vmatpush1.msra.mxu0 %v568
    %1151 = vmatprep.mubr.f32.mxu0 %v59
    %1152 = vmatmul.mubr.f32.gmra.mrb[0].mxu0 %v58
    %v1153 = vpop.f32.mrb[0].mxu0
    %v1154 = vadd.f32 %v1083, %v1153
    %v1155 = vpop.f32.mrb[0].mxu0
    %v1156 = vadd.f32 %v1085, %v1155
    %1157 = vdwg.mxu0
    %1158 = vmatprep.subr.mxu0 %v67
    %1159 = vmatpush1.msra.mxu0 %v66
    %1160 = vmatprep.subr.mxu0 %v75
    %1161 = vmatpush1.msra.mxu0 %v74
    %1162 = vmatprep.subr.mxu0 %v83
    %1163 = vmatpush1.msra.mxu0 %v82
    %1164 = vmatprep.subr.mxu0 %v91
    %1165 = vmatpush1.msra.mxu0 %v90
    %1166 = vmatprep.subr.mxu0 %v99
    %1167 = vmatpush1.msra.mxu0 %v98
    %1168 = vmatprep.subr.mxu0 %v107
    %1169 = vmatpush1.msra.mxu0 %v106
    %1170 = vmatprep.subr.mxu0 %v115
    %1171 = vmatpush1.msra.mxu0 %v114
    %1172 = vmatprep.subr.mxu0 %v123
    %1173 = vmatpush1.msra.mxu0 %v122
    %1174 = vmatprep.subr.mxu0 %v131
    %1175 = vmatpush1.msra.mxu0 %v130
    %1176 = vmatprep.subr.mxu0 %v139
    %1177 = vmatpush1.msra.mxu0 %v138
    %1178 = vmatprep.subr.mxu0 %v147
    %1179 = vmatpush1.msra.mxu0 %v146
    %1180 = vmatprep.subr.mxu0 %v155
    %1181 = vmatpush1.msra.mxu0 %v154
    %1182 = vmatprep.subr.mxu0 %v163
    %1183 = vmatpush1.msra.mxu0 %v162
    %1184 = vmatprep.subr.mxu0 %v171
    %1185 = vmatpush1.msra.mxu0 %v170
    %1186 = vmatprep.subr.mxu0 %v179
    %1187 = vmatpush1.msra.mxu0 %v178
    %1188 = vmatprep.subr.mxu0 %v187
    %1189 = vmatpush1.msra.mxu0 %v186
    %1190 = vmatprep.subr.mxu0 %v195
    %1191 = vmatpush1.msra.mxu0 %v194
    %1192 = vmatprep.subr.mxu0 %v203
    %1193 = vmatpush1.msra.mxu0 %v202
    %1194 = vmatprep.subr.mxu0 %v211
    %1195 = vmatpush1.msra.mxu0 %v210
    %1196 = vmatprep.subr.mxu0 %v219
    %1197 = vmatpush1.msra.mxu0 %v218
    %1198 = vmatprep.subr.mxu0 %v227
    %1199 = vmatpush1.msra.mxu0 %v226
    %1200 = vmatprep.subr.mxu0 %v235
    %1201 = vmatpush1.msra.mxu0 %v234
    %1202 = vmatprep.subr.mxu0 %v243
    %1203 = vmatpush1.msra.mxu0 %v242
    %1204 = vmatprep.subr.mxu0 %v251
    %1205 = vmatpush1.msra.mxu0 %v250
    %1206 = vmatprep.subr.mxu0 %v259
    %1207 = vmatpush1.msra.mxu0 %v258
    %1208 = vmatprep.subr.mxu0 %v267
    %1209 = vmatpush1.msra.mxu0 %v266
    %1210 = vmatprep.subr.mxu0 %v275
    %1211 = vmatpush1.msra.mxu0 %v274
    %1212 = vmatprep.subr.mxu0 %v283
    %1213 = vmatpush1.msra.mxu0 %v282
    %1214 = vmatprep.subr.mxu0 %v291
    %1215 = vmatpush1.msra.mxu0 %v290
    %1216 = vmatprep.subr.mxu0 %v299
    %1217 = vmatpush1.msra.mxu0 %v298
    %1218 = vmatprep.subr.mxu0 %v307
    %1219 = vmatpush1.msra.mxu0 %v306
    %1220 = vmatprep.subr.mxu0 %v315
    %1221 = vmatpush1.msra.mxu0 %v314
    %1222 = vmatprep.mubr.f32.mxu0 %v57
    %1223 = vmatmul.mubr.f32.gmra.mrb[0].mxu0 %v56
    %v1224 = vpop.f32.mrb[0].mxu0
    %v1225 = vadd.f32 0.0, %v1224
    %v1226 = vpop.f32.mrb[0].mxu0
    %v1227 = vadd.f32 0.0, %v1226
    %1228 = vdwg.mxu0
    %1229 = vmatprep.subr.mxu0 %v323
    %1230 = vmatpush1.msra.mxu0 %v322
    %1231 = vmatprep.subr.mxu0 %v331
    %1232 = vmatpush1.msra.mxu0 %v330
    %1233 = vmatprep.subr.mxu0 %v339
    %1234 = vmatpush1.msra.mxu0 %v338
    %1235 = vmatprep.subr.mxu0 %v347
    %1236 = vmatpush1.msra.mxu0 %v346
    %1237 = vmatprep.subr.mxu0 %v355
    %1238 = vmatpush1.msra.mxu0 %v354
    %1239 = vmatprep.subr.mxu0 %v363
    %1240 = vmatpush1.msra.mxu0 %v362
    %1241 = vmatprep.subr.mxu0 %v371
    %1242 = vmatpush1.msra.mxu0 %v370
    %1243 = vmatprep.subr.mxu0 %v379
    %1244 = vmatpush1.msra.mxu0 %v378
    %1245 = vmatprep.subr.mxu0 %v387
    %1246 = vmatpush1.msra.mxu0 %v386
    %1247 = vmatprep.subr.mxu0 %v395
    %1248 = vmatpush1.msra.mxu0 %v394
    %1249 = vmatprep.subr.mxu0 %v403
    %1250 = vmatpush1.msra.mxu0 %v402
    %1251 = vmatprep.subr.mxu0 %v411
    %1252 = vmatpush1.msra.mxu0 %v410
    %1253 = vmatprep.subr.mxu0 %v419
    %1254 = vmatpush1.msra.mxu0 %v418
    %1255 = vmatprep.subr.mxu0 %v427
    %1256 = vmatpush1.msra.mxu0 %v426
    %1257 = vmatprep.subr.mxu0 %v435
    %1258 = vmatpush1.msra.mxu0 %v434
    %1259 = vmatprep.subr.mxu0 %v443
    %1260 = vmatpush1.msra.mxu0 %v442
    %1261 = vmatprep.subr.mxu0 %v451
    %1262 = vmatpush1.msra.mxu0 %v450
    %1263 = vmatprep.subr.mxu0 %v459
    %1264 = vmatpush1.msra.mxu0 %v458
    %1265 = vmatprep.subr.mxu0 %v467
    %1266 = vmatpush1.msra.mxu0 %v466
    %1267 = vmatprep.subr.mxu0 %v475
    %1268 = vmatpush1.msra.mxu0 %v474
    %1269 = vmatprep.subr.mxu0 %v483
    %1270 = vmatpush1.msra.mxu0 %v482
    %1271 = vmatprep.subr.mxu0 %v491
    %1272 = vmatpush1.msra.mxu0 %v490
    %1273 = vmatprep.subr.mxu0 %v499
    %1274 = vmatpush1.msra.mxu0 %v498
    %1275 = vmatprep.subr.mxu0 %v507
    %1276 = vmatpush1.msra.mxu0 %v506
    %1277 = vmatprep.subr.mxu0 %v515
    %1278 = vmatpush1.msra.mxu0 %v514
    %1279 = vmatprep.subr.mxu0 %v523
    %1280 = vmatpush1.msra.mxu0 %v522
    %1281 = vmatprep.subr.mxu0 %v531
    %1282 = vmatpush1.msra.mxu0 %v530
    %1283 = vmatprep.subr.mxu0 %v539
    %1284 = vmatpush1.msra.mxu0 %v538
    %1285 = vmatprep.subr.mxu0 %v547
    %1286 = vmatpush1.msra.mxu0 %v546
    %1287 = vmatprep.subr.mxu0 %v555
    %1288 = vmatpush1.msra.mxu0 %v554
    %1289 = vmatprep.subr.mxu0 %v563
    %1290 = vmatpush1.msra.mxu0 %v562
    %1291 = vmatprep.subr.mxu0 %v571
    %1292 = vmatpush1.msra.mxu0 %v570
    %1293 = vmatprep.mubr.f32.mxu0 %v59
    %1294 = vmatmul.mubr.f32.gmra.mrb[0].mxu0 %v58
    %v1295 = vpop.f32.mrb[0].mxu0
    %v1296 = vadd.f32 %v1225, %v1295
    %v1297 = vpop.f32.mrb[0].mxu0
    %v1298 = vadd.f32 %v1227, %v1297
    %1299 = vdwg.mxu0
    %v1300 = vmax.f32 %v1154, 0.0
    %v1301 = vmax.f32 %v1156, 0.0
    %v1302 = vmax.f32 %v1296, 0.0
    %v1303 = vmax.f32 %v1298, 0.0
    %v1304 = vsub.f32 0.0, %v870
    %v1305 = vsub.f32 0.0, %v872
    %v1306 = vsub.f32 0.0, %v1012
    %v1307 = vsub.f32 0.0, %v1014
    %v1308 = vmul.f32 %v1304, 1.442695
    %v1309 = vpow.pop %v1308
    %v1310 = vmul.f32 %v1305, 1.442695
    %v1311 = vpow.pop %v1310
    %v1312 = vmul.f32 %v1306, 1.442695
    %v1313 = vpow.pop %v1312
    %v1314 = vmul.f32 %v1307, 1.442695
    %v1315 = vpow.pop %v1314
    %v1316 = vadd.f32 %v1309, 1.0
    %v1317 = vadd.f32 %v1311, 1.0
    %v1318 = vadd.f32 %v1313, 1.0
    %v1319 = vadd.f32 %v1315, 1.0
    %v1320 = vrcp.pop %v1316
    %v1321 = vrcp.pop %v1317
    %v1322 = vrcp.pop %v1318
    %v1323 = vrcp.pop %v1319
    %v1324 = vadd.f32 %v56, %v1300
    %v1325 = vadd.f32 %v57, %v1301
    %v1326 = vadd.f32 %v58, %v1302
    %v1327 = vadd.f32 %v59, %v1303
    %v1328 = vmul.f32 %v1320, %v1300
    %v1329 = vmul.f32 %v1321, %v1301
    %v1330 = vmul.f32 %v1322, %v1302
    %v1331 = vmul.f32 %v1323, %v1303
    %v1332 = vadd.f32 %v1324, %v1328
    %v1333 = vadd.f32 %v1325, %v1329
    %v1334 = vadd.f32 %v1326, %v1330
    %v1335 = vadd.f32 %v1327, %v1331
    %1336 = vmatprep.subr.mxu0 %v573
    %1337 = vmatpush1.msra.mxu0 %v572
    %1338 = vmatprep.subr.mxu0 %v575
    %1339 = vmatpush1.msra.mxu0 %v574
    %1340 = vmatprep.subr.mxu0 %v577
    %1341 = vmatpush1.msra.mxu0 %v576
    %1342 = vmatprep.subr.mxu0 %v579
    %1343 = vmatpush1.msra.mxu0 %v578
    %1344 = vmatprep.subr.mxu0 %v581
    %1345 = vmatpush1.msra.mxu0 %v580
    %1346 = vmatprep.subr.mxu0 %v583
    %1347 = vmatpush1.msra.mxu0 %v582
    %1348 = vmatprep.subr.mxu0 %v585
    %1349 = vmatpush1.msra.mxu0 %v584
    %1350 = vmatprep.subr.mxu0 %v587
    %1351 = vmatpush1.msra.mxu0 %v586
    %1352 = vmatprep.subr.mxu0 %v589
    %1353 = vmatpush1.msra.mxu0 %v588
    %1354 = vmatprep.subr.mxu0 %v591
    %1355 = vmatpush1.msra.mxu0 %v590
    %1356 = vmatprep.subr.mxu0 %v593
    %1357 = vmatpush1.msra.mxu0 %v592
    %1358 = vmatprep.subr.mxu0 %v595
    %1359 = vmatpush1.msra.mxu0 %v594
    %1360 = vmatprep.subr.mxu0 %v597
    %1361 = vmatpush1.msra.mxu0 %v596
    %1362 = vmatprep.subr.mxu0 %v599
    %1363 = vmatpush1.msra.mxu0 %v598
    %1364 = vmatprep.subr.mxu0 %v601
    %1365 = vmatpush1.msra.mxu0 %v600
    %1366 = vmatprep.subr.mxu0 %v603
    %1367 = vmatpush1.msra.mxu0 %v602
    %1368 = vmatprep.subr.mxu0 %v605
    %1369 = vmatpush1.msra.mxu0 %v604
    %1370 = vmatprep.subr.mxu0 %v607
    %1371 = vmatpush1.msra.mxu0 %v606
    %1372 = vmatprep.subr.mxu0 %v609
    %1373 = vmatpush1.msra.mxu0 %v608
    %1374 = vmatprep.subr.mxu0 %v611
    %1375 = vmatpush1.msra.mxu0 %v610
    %1376 = vmatprep.subr.mxu0 %v613
    %1377 = vmatpush1.msra.mxu0 %v612
    %1378 = vmatprep.subr.mxu0 %v615
    %1379 = vmatpush1.msra.mxu0 %v614
    %1380 = vmatprep.subr.mxu0 %v617
    %1381 = vmatpush1.msra.mxu0 %v616
    %1382 = vmatprep.subr.mxu0 %v619
    %1383 = vmatpush1.msra.mxu0 %v618
    %1384 = vmatprep.subr.mxu0 %v621
    %1385 = vmatpush1.msra.mxu0 %v620
    %1386 = vmatprep.subr.mxu0 %v623
    %1387 = vmatpush1.msra.mxu0 %v622
    %1388 = vmatprep.subr.mxu0 %v625
    %1389 = vmatpush1.msra.mxu0 %v624
    %1390 = vmatprep.subr.mxu0 %v627
    %1391 = vmatpush1.msra.mxu0 %v626
    %1392 = vmatprep.subr.mxu0 %v629
    %1393 = vmatpush1.msra.mxu0 %v628
    %1394 = vmatprep.subr.mxu0 %v631
    %1395 = vmatpush1.msra.mxu0 %v630
    %1396 = vmatprep.subr.mxu0 %v633
    %1397 = vmatpush1.msra.mxu0 %v632
    %1398 = vmatprep.subr.mxu0 %v635
    %1399 = vmatpush1.msra.mxu0 %v634
    %1400 = vmatprep.mubr.f32.mxu0 %v1333
    %1401 = vmatmul.mubr.f32.gmra.mrb[0].mxu0 %v1332
    %v1402 = vpop.f32.mrb[0].mxu0
    %v1403 = vadd.f32 0.0, %v1402
    %v1404 = vpop.f32.mrb[0].mxu0
    %v1405 = vadd.f32 0.0, %v1404
    %1406 = vdwg.mxu0
    %1407 = vmatprep.subr.mxu0 %v637
    %1408 = vmatpush1.msra.mxu0 %v636
    %1409 = vmatprep.subr.mxu0 %v639
    %1410 = vmatpush1.msra.mxu0 %v638
    %1411 = vmatprep.subr.mxu0 %v641
    %1412 = vmatpush1.msra.mxu0 %v640
    %1413 = vmatprep.subr.mxu0 %v643
    %1414 = vmatpush1.msra.mxu0 %v642
    %1415 = vmatprep.subr.mxu0 %v645
    %1416 = vmatpush1.msra.mxu0 %v644
    %1417 = vmatprep.subr.mxu0 %v647
    %1418 = vmatpush1.msra.mxu0 %v646
    %1419 = vmatprep.subr.mxu0 %v649
    %1420 = vmatpush1.msra.mxu0 %v648
    %1421 = vmatprep.subr.mxu0 %v651
    %1422 = vmatpush1.msra.mxu0 %v650
    %1423 = vmatprep.subr.mxu0 %v653
    %1424 = vmatpush1.msra.mxu0 %v652
    %1425 = vmatprep.subr.mxu0 %v655
    %1426 = vmatpush1.msra.mxu0 %v654
    %1427 = vmatprep.subr.mxu0 %v657
    %1428 = vmatpush1.msra.mxu0 %v656
    %1429 = vmatprep.subr.mxu0 %v659
    %1430 = vmatpush1.msra.mxu0 %v658
    %1431 = vmatprep.subr.mxu0 %v661
    %1432 = vmatpush1.msra.mxu0 %v660
    %1433 = vmatprep.subr.mxu0 %v663
    %1434 = vmatpush1.msra.mxu0 %v662
    %1435 = vmatprep.subr.mxu0 %v665
    %1436 = vmatpush1.msra.mxu0 %v664
    %1437 = vmatprep.subr.mxu0 %v667
    %1438 = vmatpush1.msra.mxu0 %v666
    %1439 = vmatprep.subr.mxu0 %v669
    %1440 = vmatpush1.msra.mxu0 %v668
    %1441 = vmatprep.subr.mxu0 %v671
    %1442 = vmatpush1.msra.mxu0 %v670
    %1443 = vmatprep.subr.mxu0 %v673
    %1444 = vmatpush1.msra.mxu0 %v672
    %1445 = vmatprep.subr.mxu0 %v675
    %1446 = vmatpush1.msra.mxu0 %v674
    %1447 = vmatprep.subr.mxu0 %v677
    %1448 = vmatpush1.msra.mxu0 %v676
    %1449 = vmatprep.subr.mxu0 %v679
    %1450 = vmatpush1.msra.mxu0 %v678
    %1451 = vmatprep.subr.mxu0 %v681
    %1452 = vmatpush1.msra.mxu0 %v680
    %1453 = vmatprep.subr.mxu0 %v683
    %1454 = vmatpush1.msra.mxu0 %v682
    %1455 = vmatprep.subr.mxu0 %v685
    %1456 = vmatpush1.msra.mxu0 %v684
    %1457 = vmatprep.subr.mxu0 %v687
    %1458 = vmatpush1.msra.mxu0 %v686
    %1459 = vmatprep.subr.mxu0 %v689
    %1460 = vmatpush1.msra.mxu0 %v688
    %1461 = vmatprep.subr.mxu0 %v691
    %1462 = vmatpush1.msra.mxu0 %v690
    %1463 = vmatprep.subr.mxu0 %v693
    %1464 = vmatpush1.msra.mxu0 %v692
    %1465 = vmatprep.subr.mxu0 %v695
    %1466 = vmatpush1.msra.mxu0 %v694
    %1467 = vmatprep.subr.mxu0 %v697
    %1468 = vmatpush1.msra.mxu0 %v696
    %1469 = vmatprep.subr.mxu0 %v699
    %1470 = vmatpush1.msra.mxu0 %v698
    %1471 = vmatprep.mubr.f32.mxu0 %v1335
    %1472 = vmatmul.mubr.f32.gmra.mrb[0].mxu0 %v1334
    %v1473 = vpop.f32.mrb[0].mxu0
    %v1474 = vadd.f32 %v1403, %v1473
    %v1475 = vpop.f32.mrb[0].mxu0
    %v1476 = vadd.f32 %v1405, %v1475
    %1477 = vdwg.mxu0
    %v1478 = vmax.f32 %v1474, 0.0
    %v1479 = vmax.f32 %v1476, 0.0
    %1480 = vmatprep.subr.mxu0 0.0
    %1481 = vmatpush1.msra.mxu0 %v700
    %1482 = vmatprep.subr.mxu0 0.0
    %1483 = vmatpush1.msra.mxu0 %v701
    %1484 = vmatprep.subr.mxu0 0.0
    %1485 = vmatpush1.msra.mxu0 %v702
    %1486 = vmatprep.subr.mxu0 0.0
    %1487 = vmatpush1.msra.mxu0 %v703
    %1488 = vmatprep.subr.mxu0 0.0
    %1489 = vmatpush1.msra.mxu0 %v704
    %1490 = vmatprep.subr.mxu0 0.0
    %1491 = vmatpush1.msra.mxu0 %v705
    %1492 = vmatprep.subr.mxu0 0.0
    %1493 = vmatpush1.msra.mxu0 %v706
    %1494 = vmatprep.subr.mxu0 0.0
    %1495 = vmatpush1.msra.mxu0 %v707
    %1496 = vmatprep.subr.mxu0 0.0
    %1497 = vmatpush1.msra.mxu0 %v708
    %1498 = vmatprep.subr.mxu0 0.0
    %1499 = vmatpush1.msra.mxu0 %v709
    %1500 = vmatprep.subr.mxu0 0.0
    %1501 = vmatpush1.msra.mxu0 %v710
    %1502 = vmatprep.subr.mxu0 0.0
    %1503 = vmatpush1.msra.mxu0 %v711
    %1504 = vmatprep.subr.mxu0 0.0
    %1505 = vmatpush1.msra.mxu0 %v712
    %1506 = vmatprep.subr.mxu0 0.0
    %1507 = vmatpush1.msra.mxu0 %v713
    %1508 = vmatprep.subr.mxu0 0.0
    %1509 = vmatpush1.msra.mxu0 %v714
    %1510 = vmatprep.subr.mxu0 0.0
    %1511 = vmatpush1.msra.mxu0 %v715
    %1512 = vmatprep.subr.mxu0 0.0
    %1513 = vmatpush1.msra.mxu0 %v716
    %1514 = vmatprep.subr.mxu0 0.0
    %1515 = vmatpush1.msra.mxu0 %v717
    %1516 = vmatprep.subr.mxu0 0.0
    %1517 = vmatpush1.msra.mxu0 %v718
    %1518 = vmatprep.subr.mxu0 0.0
    %1519 = vmatpush1.msra.mxu0 %v719
    %1520 = vmatprep.subr.mxu0 0.0
    %1521 = vmatpush1.msra.mxu0 %v720
    %1522 = vmatprep.subr.mxu0 0.0
    %1523 = vmatpush1.msra.mxu0 %v721
    %1524 = vmatprep.subr.mxu0 0.0
    %1525 = vmatpush1.msra.mxu0 %v722
    %1526 = vmatprep.subr.mxu0 0.0
    %1527 = vmatpush1.msra.mxu0 %v723
    %1528 = vmatprep.subr.mxu0 0.0
    %1529 = vmatpush1.msra.mxu0 %v724
    %1530 = vmatprep.subr.mxu0 0.0
    %1531 = vmatpush1.msra.mxu0 %v725
    %1532 = vmatprep.subr.mxu0 0.0
    %1533 = vmatpush1.msra.mxu0 %v726
    %1534 = vmatprep.subr.mxu0 0.0
    %1535 = vmatpush1.msra.mxu0 %v727
    %1536 = vmatprep.subr.mxu0 0.0
    %1537 = vmatpush1.msra.mxu0 %v728
    %1538 = vmatprep.subr.mxu0 0.0
    %1539 = vmatpush1.msra.mxu0 %v729
    %1540 = vmatprep.subr.mxu0 0.0
    %1541 = vmatpush1.msra.mxu0 %v730
    %1542 = vmatprep.subr.mxu0 0.0
    %1543 = vmatpush1.msra.mxu0 %v731
    %1544 = vmatprep.mubr.f32.mxu0 %v1479
    %1545 = vmatmul.mubr.f32.gmra.mrb[0].mxu0 %v1478
    %v1546 = vpop.f32.mrb[0].mxu0
    %v1547 = vadd.f32 0.0, %v1546
    %v1548 = vpop.f32.mrb[0].mxu0
    %1549 = vdwg.mxu0
    %v1550 = vlaneseq
    %v1551 = vand.u32 %v1550, 127
    %vm1552 = vcmask 80896
    %v1553 = vsel %vm1552, %v1547, -inf
    %1554 = vmax.xlane.f32.xlu0 %v1553
    %v1555 = vpop.xlane.xlu0 %1554
    %vm1556 = vcmp.eq.f32.partialorder %v1547, %v1555
    %v1557 = vsel %vm1556, %v1551, 10
    %v1558 = vsel %vm1552, %v1557, 2147483647
    %v1559 = vand.u32 %v1558, 65535
    %v1560 = vshra.s32 %v1558, 16
    %v1561 = vcvt.s32.f32 %v1559
    %v1562 = vcvt.s32.f32 %v1560
    %1563 = vmin.xlane.f32.xlu0 %v1562
    %v1564 = vpop.xlane.xlu0 %1563
    %vm1565 = vcmp.eq.f32.partialorder %v1562, %v1564
    %v1566 = vsel %vm1565, %v1561, inf
    %1567 = vmin.xlane.f32.xlu0 %v1566
    %v1568 = vpop.xlane.xlu0 %1567
    %v1569 = vcvt.f32.s32 %v1568
    %v1570 = vcvt.f32.s32 %v1564
    %v1571 = vshll.u32 %v1570, 16
    %v1572 = vadd.s32 %v1571, %v1569
    %vm1573 = vcmask 7168
    %1574 = vst.msk [vmem:[%s4] sm:$0xff] %vm1573, %v1572
    // Predicated region
    $region30: #{tpu_custom_call.1} parent=1 // pred_check
      _
    $region31: #{tpu_custom_call.1} parent=1 // pred_check_branch
      %1576 = sbr.rel (0) target = $region33
    $region32: #{tpu_custom_call.1} parent=1 // pred_region
      _
    $region33: #{tpu_custom_call.1} parent=1 // pred_fallthru
      _
    // Predicated region
    $region34: #{tpu_custom_call.1} parent=1 // pred_check
      _
    $region35: #{tpu_custom_call.1} parent=1 // pred_check_branch
      %1578 = sbr.rel (0) target = $region37
    $region36: #{tpu_custom_call.1} parent=1 // pred_region
      _
    $region37: #{tpu_custom_call.1} parent=1 // pred_fallthru
      _
    %1579 = vsyncpa [#allocation3], 1
    %1580 = vsyncpa [#allocation5], 1

</llo_original>
